<compile_context>
chip_gen: v7x
topology: tpu7x:2x2x1
jax: 0.10.0
libtpu: 0.0.40
codegen_flags: <defaults>
</compile_context>

<pallas_src>
import functools

import jax
import jax.numpy as jnp
import numpy as np
from jax.experimental import pallas as pl
from jax.experimental.pallas import tpu as pltpu

_LANES = 128


# ----------------------------------------------------------------------------
# Helpers (parameter construction, plain JAX)
# ----------------------------------------------------------------------------
def _celu(x):
    # CELU with alpha = 1.0 (PyTorch default).
    return jnp.where(x > 0, x, jnp.exp(x) - 1.0)


def _spectral_normalize(w):
    sigma = jnp.linalg.svd(w, compute_uv=False)[0]
    return w / sigma


def _init_linear(key, fan_in, fan_out):
    kw, kb = jax.random.split(key)
    bound = 1.0 / jnp.sqrt(jnp.float32(fan_in))
    w = jax.random.uniform(kw, (fan_in, fan_out), jnp.float32, -bound, bound)
    b = jax.random.uniform(kb, (1, fan_out), jnp.float32, -bound, bound)
    return _spectral_normalize(w), b


def _init_mlp(key, in_, out_, hidden_):
    dims = [in_] + list(hidden_) + [out_]
    keys = jax.random.split(key, len(dims) - 1)
    return [_init_linear(k, dims[i], dims[i + 1]) for i, k in enumerate(keys)]


# ----------------------------------------------------------------------------
# Constant packing: every weight / bias / selector goes into one f32 buffer of
# shape (sum of 8-row-aligned slabs, 128); the kernel slices it statically.
# ----------------------------------------------------------------------------
def _pack_constants(named_arrays):
    slabs, layout, row = [], {}, 0
    for name, a in named_arrays:
        a = jnp.asarray(a, jnp.float32)
        r, c = a.shape
        assert c <= _LANES, f"{name} is wider than one lane tile ({c} > {_LANES})"
        rp = -(-r // 8) * 8
        slab = jnp.zeros((rp, _LANES), jnp.float32).at[:r, :c].set(a)
        slabs.append(slab)
        layout[name] = (row, r, c)
        row += rp
    return jnp.concatenate(slabs, axis=0), layout


# ----------------------------------------------------------------------------
# Fused kernel: edge MLP + skeleton mask + i-reduction + merged node MLPs
# ----------------------------------------------------------------------------
def _gnn_kernel(layout, edges_ref, nodes_ref, skel_ref, wbuf_ref,
                nodes_out_ref, edge_out_ref):
    f32 = jnp.float32

    def cst(name):
        off, r, c = layout[name]
        return wbuf_ref[off:off + r, 0:c]

    e = edges_ref[...]       # (B*N*N, Fe)   flat row r = b*N*N + i*N + j
    nodes = nodes_ref[...]   # (B*N, Fn)     flat row q = b*N + n
    skel = skel_ref[...]     # (B*N*N, 1)

    # Small per-node dots; all independent of the edge path (issued early).
    ni = jnp.dot(nodes, cst("w1i"), preferred_element_type=f32)    # (BN, H1)
    nj = jnp.dot(nodes, cst("w1j"), preferred_element_type=f32)    # (BN, H1)
    g0 = jnp.dot(nodes, cst("nw1b"), preferred_element_type=f32)   # (BN, 2*Fout)

    # Broadcast node projections to all edge rows with ONE constant-selector
    # matmul: row (b, i, j) receives ni[b, i] + nj[b, j].
    nij = jnp.concatenate([ni, nj], axis=0)                          # (2BN, H1)
    contrib = jnp.dot(cst("sel"), nij, preferred_element_type=f32)   # (BNN, H1)

    # Edge MLP over all B*N*N rows at once (first layer is a split matmul,
    # replacing the lane-dim concat [edges, n_j, n_i] @ W1).
    h = _celu(jnp.dot(e, cst("w1e"), preferred_element_type=f32)
              + contrib + cst("eb1"))
    h = _celu(jnp.dot(h, cst("ew2"), preferred_element_type=f32) + cst("eb2"))
    y = jnp.dot(h, cst("ew3"), preferred_element_type=f32) + cst("eb3")
    y = y * skel                                                     # (BNN, Fout)
    edge_out_ref[...] = y

    # nodes_new[b, j] = sum_i y[b, i, j]  -> one constant-selector MXU matmul.
    nodes_new = jnp.dot(cst("red"), y, preferred_element_type=f32)   # (BN, Fout)

    # Merged node MLP: node_linear(nodes_new) and node_linear2(nodes) run as
    # one block-diagonal chain; the final stacked-W3 dot yields y1 + y2.
    l1 = _celu(jnp.dot(nodes_new, cst("nw1a"), preferred_element_type=f32)
               + g0 + cst("nb1"))
    l2 = _celu(jnp.dot(l1, cst("nw2"), preferred_element_type=f32) + cst("nb2"))
    nodes_out_ref[...] = (jnp.dot(l2, cst("nw3"), preferred_element_type=f32)
                          + cst("nb3"))


# ----------------------------------------------------------------------------
# Wrapper
# ----------------------------------------------------------------------------
def gnn_sn_forward(nodes, edges, skeleton, params):
    B, N, Fn = nodes.shape
    Fe = edges.shape[-1]
    NN, BN, BNN = N * N, B * N, B * N * N
    Fout = params["edge"][-1][0].shape[1]

    # Split first edge-layer weight by input group (edges | nodes_j | nodes_i).
    (ew1, eb1), (ew2, eb2), (ew3, eb3) = params["edge"]
    w1e, w1j, w1i = ew1[:Fe], ew1[Fe:Fe + Fn], ew1[Fe + Fn:]

    # Merge node_linear (Fout->Fout) and node_linear2 (Fn->Fout) MLPs:
    # block-diagonal layers 1/2, vertically-stacked layer 3, summed layer-3 bias.
    (aw1, ab1), (aw2, ab2), (aw3, ab3) = params["node"]
    (cw1, cb1), (cw2, cb2), (cw3, cb3) = params["node2"]
    Ha, Hc = aw1.shape[1], cw1.shape[1]
    nw1a = jnp.zeros((aw1.shape[0], Ha + Hc), jnp.float32).at[:, :Ha].set(aw1)
    nw1b = jnp.zeros((cw1.shape[0], Ha + Hc), jnp.float32).at[:, Ha:].set(cw1)
    nb1 = jnp.concatenate([ab1, cb1], axis=1)
    nw2 = jnp.zeros((Ha + Hc, aw2.shape[1] + cw2.shape[1]), jnp.float32)
    nw2 = nw2.at[:Ha, :aw2.shape[1]].set(aw2).at[Ha:, aw2.shape[1]:].set(cw2)
    nb2 = jnp.concatenate([ab2, cb2], axis=1)
    nw3 = jnp.concatenate([aw3, cw3], axis=0)
    nb3 = ab3 + cb3

    # Constant selector matrices (batch folded into the row index, built once).
    sel = np.zeros((BNN, 2 * BN), np.float32)
    red = np.zeros((BN, BNN), np.float32)
    for b in range(B):
        for i in range(N):
            for j in range(N):
                r = b * NN + i * N + j
                sel[r, b * N + i] = 1.0          # picks ni[b, i]
                sel[r, BN + b * N + j] = 1.0     # picks nj[b, j]
                red[b * N + j, r] = 1.0          # i-reduction for nodes_new

    consts, layout = _pack_constants([
        ("w1e", w1e), ("w1i", w1i), ("w1j", w1j), ("eb1", eb1),
        ("ew2", ew2), ("eb2", eb2), ("ew3", ew3), ("eb3", eb3),
        ("sel", sel), ("red", red),
        ("nw1a", nw1a), ("nw1b", nw1b), ("nb1", nb1),
        ("nw2", nw2), ("nb2", nb2), ("nw3", nw3), ("nb3", nb3),
    ])

    # Flatten (b, i, j) outside the kernel (free XLA reshapes).
    edges_flat = edges.reshape(BNN, Fe)
    skel_flat = skeleton.reshape(BNN, 1)
    nodes_flat = nodes.reshape(BN, Fn)

    def vmem():
        return pl.BlockSpec(memory_space=pltpu.MemorySpace.VMEM)

    nodes_out_flat, edge_out_flat = pl.pallas_call(
        functools.partial(_gnn_kernel, layout),
        out_shape=(
            jax.ShapeDtypeStruct((BN, Fout), jnp.float32),
            jax.ShapeDtypeStruct((BNN, Fout), jnp.float32),
        ),
        in_specs=[vmem(), vmem(), vmem(), vmem()],
        out_specs=(vmem(), vmem()),
    )(edges_flat, nodes_flat, skel_flat, consts)

    return (nodes_out_flat.reshape(B, N, Fout),
            edge_out_flat.reshape(B, N, N, Fout))


# ----------------------------------------------------------------------------
# Pure-JAX reference (correctness check)
# ----------------------------------------------------------------------------
def _mlp_ref(x, layers):
    for idx, (w, b) in enumerate(layers):
        x = x @ w + b
        if idx < len(layers) - 1:
            x = _celu(x)
    return x


def gnn_sn_reference(nodes, edges, skeleton, params):
    B, N, Fn = nodes.shape
    nodes_j = jnp.broadcast_to(nodes[:, None, :, :], (B, N, N, Fn))
    nodes_i = jnp.broadcast_to(nodes[:, :, None, :], (B, N, N, Fn))
    e = jnp.concatenate([edges, nodes_j, nodes_i], axis=-1)
    e = _mlp_ref(e, params["edge"])
    e = e * skeleton
    nn_ = jnp.sum(e, axis=1)
    nn_ = _mlp_ref(nn_, params["node"])
    out_nodes = _mlp_ref(nodes, params["node2"]) + nn_
    return out_nodes, e


# ----------------------------------------------------------------------------
# Main
# ----------------------------------------------------------------------------
if __name__ == "__main__":
    B, N = 2, 8
    n_nodefeat_in, n_edgefeat_in, n_feat_out = 4, 4, 32
    fin_edge = 2 * n_nodefeat_in + n_edgefeat_in

    key = jax.random.PRNGKey(0)
    k_nodes, k_edges, k_skel, k_e, k_n, k_n2 = jax.random.split(key, 6)

    nodes = jax.random.normal(k_nodes, (B, N, n_nodefeat_in), jnp.float32)
    edges = jax.random.normal(k_edges, (B, N, N, n_edgefeat_in), jnp.float32)
    skeleton = jax.random.bernoulli(k_skel, 0.5, (B, N, N, 1)).astype(jnp.float32)

    params = {
        # edge_linear: mlp_sn(2*Fn+Fe, Fout, [2*Fn+Fe, 2*Fn+Fe])
        "edge": _init_mlp(k_e, fin_edge, n_feat_out, [fin_edge, fin_edge]),
        # node_linear: mlp_sn(Fout, Fout, [Fout, Fout])
        "node": _init_mlp(k_n, n_feat_out, n_feat_out, [n_feat_out, n_feat_out]),
        # node_linear2: mlp_sn(Fn, Fout, [Fout, Fout])
        "node2": _init_mlp(k_n2, n_nodefeat_in, n_feat_out, [n_feat_out, n_feat_out]),
    }

    nodes_out, edges_out = gnn_sn_forward(nodes, edges, skeleton, params)
    jax.block_until_ready((nodes_out, edges_out))

    nodes_ref, edges_ref = gnn_sn_reference(nodes, edges, skeleton, params)
    assert nodes_out.shape == (B, N, n_feat_out)
    assert edges_out.shape == (B, N, N, n_feat_out)
    assert jnp.allclose(nodes_out, nodes_ref, atol=1e-3, rtol=1e-3)
    assert jnp.allclose(edges_out, edges_ref, atol=1e-3, rtol=1e-3)

    print("KERNEL_OK")
</pallas_src>

<mosaic_0001>
module attributes {stable_mosaic.version = 11 : i64} {
  func.func @_gnn_kernel(%arg0: memref<128x4xf32, #tpu.memory_space<vmem>>, %arg1: memref<16x4xf32, #tpu.memory_space<vmem>>, %arg2: memref<128x1xf32, #tpu.memory_space<vmem>>, %arg3: memref<416x128xf32, #tpu.memory_space<vmem>>, %arg4: memref<16x32xf32, #tpu.memory_space<vmem>>, %arg5: memref<128x32xf32, #tpu.memory_space<vmem>>) attributes {dimension_semantics = [], scalar_prefetch = 0 : i64, scratch_operands = 0 : i64, tpu.core_type = #tpu.core_type<tc>} {
    %c0 = arith.constant 0 : index
    %c0_0 = arith.constant 0 : index
    %0 = vector.load %arg0[%c0, %c0_0] : memref<128x4xf32, #tpu.memory_space<vmem>>, vector<128x4xf32>
    %c0_1 = arith.constant 0 : index
    %c0_2 = arith.constant 0 : index
    %1 = vector.load %arg1[%c0_1, %c0_2] : memref<16x4xf32, #tpu.memory_space<vmem>>, vector<16x4xf32>
    %c0_3 = arith.constant 0 : index
    %c0_4 = arith.constant 0 : index
    %2 = vector.load %arg2[%c0_3, %c0_4] : memref<128x1xf32, #tpu.memory_space<vmem>>, vector<128x1xf32>
    %c8 = arith.constant 8 : index
    %c0_5 = arith.constant 0 : index
    %3 = vector.load %arg3[%c8, %c0_5] : memref<416x128xf32, #tpu.memory_space<vmem>>, vector<4x12xf32>
    %cst = arith.constant dense<0.000000e+00> : vector<16x12xf32>
    %4 = tpu.matmul %1, %3, %cst {dimension_numbers = #tpu.dot_dimension_numbers<[1], [0], [0], [1], [0, 0, 1, 1], [], []>} : vector<16x4xf32>, vector<4x12xf32>, vector<16x12xf32> -> vector<16x12xf32>
    %c16 = arith.constant 16 : index
    %c0_6 = arith.constant 0 : index
    %5 = vector.load %arg3[%c16, %c0_6] : memref<416x128xf32, #tpu.memory_space<vmem>>, vector<4x12xf32>
    %cst_7 = arith.constant dense<0.000000e+00> : vector<16x12xf32>
    %6 = tpu.matmul %1, %5, %cst_7 {dimension_numbers = #tpu.dot_dimension_numbers<[1], [0], [0], [1], [0, 0, 1, 1], [], []>} : vector<16x4xf32>, vector<4x12xf32>, vector<16x12xf32> -> vector<16x12xf32>
    %c256 = arith.constant 256 : index
    %c0_8 = arith.constant 0 : index
    %7 = vector.load %arg3[%c256, %c0_8] : memref<416x128xf32, #tpu.memory_space<vmem>>, vector<4x64xf32>
    %cst_9 = arith.constant dense<0.000000e+00> : vector<16x64xf32>
    %8 = tpu.matmul %1, %7, %cst_9 {dimension_numbers = #tpu.dot_dimension_numbers<[1], [0], [0], [1], [0, 0, 1, 1], [], []>} : vector<16x4xf32>, vector<4x64xf32>, vector<16x64xf32> -> vector<16x64xf32>
    %9 = tpu.concatenate %4, %6 in 0 : vector<16x12xf32>, vector<16x12xf32> -> vector<32x12xf32>
    %c80 = arith.constant 80 : index
    %c0_10 = arith.constant 0 : index
    %10 = vector.load %arg3[%c80, %c0_10] : memref<416x128xf32, #tpu.memory_space<vmem>>, vector<128x32xf32>
    %cst_11 = arith.constant dense<0.000000e+00> : vector<128x12xf32>
    %11 = tpu.matmul %10, %9, %cst_11 {dimension_numbers = #tpu.dot_dimension_numbers<[1], [0], [0], [1], [0, 0, 1, 1], [], []>} : vector<128x32xf32>, vector<32x12xf32>, vector<128x12xf32> -> vector<128x12xf32>
    %c0_12 = arith.constant 0 : index
    %c0_13 = arith.constant 0 : index
    %12 = vector.load %arg3[%c0_12, %c0_13] : memref<416x128xf32, #tpu.memory_space<vmem>>, vector<4x12xf32>
    %cst_14 = arith.constant dense<0.000000e+00> : vector<128x12xf32>
    %13 = tpu.matmul %0, %12, %cst_14 {dimension_numbers = #tpu.dot_dimension_numbers<[1], [0], [0], [1], [0, 0, 1, 1], [], []>} : vector<128x4xf32>, vector<4x12xf32>, vector<128x12xf32> -> vector<128x12xf32>
    %14 = arith.addf %13, %11 : vector<128x12xf32>
    %c24 = arith.constant 24 : index
    %c0_15 = arith.constant 0 : index
    %15 = vector.load %arg3[%c24, %c0_15] : memref<416x128xf32, #tpu.memory_space<vmem>>, vector<1x12xf32>
    %16 = vector.broadcast %15 : vector<1x12xf32> to vector<128x12xf32>
    %17 = arith.addf %14, %16 : vector<128x12xf32>
    %cst_16 = arith.constant 0.000000e+00 : f32
    %18 = vector.broadcast %cst_16 : f32 to vector<128x12xf32>
    %19 = arith.cmpf ogt, %17, %18 : vector<128x12xf32>
    %20 = math.exp %17 : vector<128x12xf32>
    %cst_17 = arith.constant 1.000000e+00 : f32
    %21 = vector.broadcast %cst_17 : f32 to vector<128x12xf32>
    %22 = arith.subf %20, %21 : vector<128x12xf32>
    %23 = arith.select %19, %17, %22 : vector<128x12xi1>, vector<128x12xf32>
    %c32 = arith.constant 32 : index
    %c0_18 = arith.constant 0 : index
    %24 = vector.load %arg3[%c32, %c0_18] : memref<416x128xf32, #tpu.memory_space<vmem>>, vector<12x12xf32>
    %cst_19 = arith.constant dense<0.000000e+00> : vector<128x12xf32>
    %25 = tpu.matmul %23, %24, %cst_19 {dimension_numbers = #tpu.dot_dimension_numbers<[1], [0], [0], [1], [0, 0, 1, 1], [], []>} : vector<128x12xf32>, vector<12x12xf32>, vector<128x12xf32> -> vector<128x12xf32>
    %c48 = arith.constant 48 : index
    %c0_20 = arith.constant 0 : index
    %26 = vector.load %arg3[%c48, %c0_20] : memref<416x128xf32, #tpu.memory_space<vmem>>, vector<1x12xf32>
    %27 = vector.broadcast %26 : vector<1x12xf32> to vector<128x12xf32>
    %28 = arith.addf %25, %27 : vector<128x12xf32>
    %cst_21 = arith.constant 0.000000e+00 : f32
    %29 = vector.broadcast %cst_21 : f32 to vector<128x12xf32>
    %30 = arith.cmpf ogt, %28, %29 : vector<128x12xf32>
    %31 = math.exp %28 : vector<128x12xf32>
    %cst_22 = arith.constant 1.000000e+00 : f32
    %32 = vector.broadcast %cst_22 : f32 to vector<128x12xf32>
    %33 = arith.subf %31, %32 : vector<128x12xf32>
    %34 = arith.select %30, %28, %33 : vector<128x12xi1>, vector<128x12xf32>
    %c56 = arith.constant 56 : index
    %c0_23 = arith.constant 0 : index
    %35 = vector.load %arg3[%c56, %c0_23] : memref<416x128xf32, #tpu.memory_space<vmem>>, vector<12x32xf32>
    %cst_24 = arith.constant dense<0.000000e+00> : vector<128x32xf32>
    %36 = tpu.matmul %34, %35, %cst_24 {dimension_numbers = #tpu.dot_dimension_numbers<[1], [0], [0], [1], [0, 0, 1, 1], [], []>} : vector<128x12xf32>, vector<12x32xf32>, vector<128x32xf32> -> vector<128x32xf32>
    %c72 = arith.constant 72 : index
    %c0_25 = arith.constant 0 : index
    %37 = vector.load %arg3[%c72, %c0_25] : memref<416x128xf32, #tpu.memory_space<vmem>>, vector<1x32xf32>
    %38 = vector.broadcast %37 : vector<1x32xf32> to vector<128x32xf32>
    %39 = arith.addf %36, %38 : vector<128x32xf32>
    %40 = vector.broadcast %2 : vector<128x1xf32> to vector<128x32xf32>
    %41 = arith.mulf %39, %40 : vector<128x32xf32>
    %c0_26 = arith.constant 0 : index
    %c0_27 = arith.constant 0 : index
    %42 = vector.load %arg5[%c0_26, %c0_27] : memref<128x32xf32, #tpu.memory_space<vmem>>, vector<128x32xf32>
    tpu.vector_store %arg5[%c0_26, %c0_27], %41 {strides = array<i32>} : memref<128x32xf32, #tpu.memory_space<vmem>>, vector<128x32xf32>,
    %c208 = arith.constant 208 : index
    %c0_28 = arith.constant 0 : index
    %43 = vector.load %arg3[%c208, %c0_28] : memref<416x128xf32, #tpu.memory_space<vmem>>, vector<16x128xf32>
    %cst_29 = arith.constant dense<0.000000e+00> : vector<16x32xf32>
    %44 = tpu.matmul %43, %41, %cst_29 {dimension_numbers = #tpu.dot_dimension_numbers<[1], [0], [0], [1], [0, 0, 1, 1], [], []>} : vector<16x128xf32>, vector<128x32xf32>, vector<16x32xf32> -> vector<16x32xf32>
    %c224 = arith.constant 224 : index
    %c0_30 = arith.constant 0 : index
    %45 = vector.load %arg3[%c224, %c0_30] : memref<416x128xf32, #tpu.memory_space<vmem>>, vector<32x64xf32>
    %cst_31 = arith.constant dense<0.000000e+00> : vector<16x64xf32>
    %46 = tpu.matmul %44, %45, %cst_31 {dimension_numbers = #tpu.dot_dimension_numbers<[1], [0], [0], [1], [0, 0, 1, 1], [], []>} : vector<16x32xf32>, vector<32x64xf32>, vector<16x64xf32> -> vector<16x64xf32>
    %47 = arith.addf %46, %8 : vector<16x64xf32>
    %c264 = arith.constant 264 : index
    %c0_32 = arith.constant 0 : index
    %48 = vector.load %arg3[%c264, %c0_32] : memref<416x128xf32, #tpu.memory_space<vmem>>, vector<1x64xf32>
    %49 = vector.broadcast %48 : vector<1x64xf32> to vector<16x64xf32>
    %50 = arith.addf %47, %49 : vector<16x64xf32>
    %cst_33 = arith.constant 0.000000e+00 : f32
    %51 = vector.broadcast %cst_33 : f32 to vector<16x64xf32>
    %52 = arith.cmpf ogt, %50, %51 : vector<16x64xf32>
    %53 = math.exp %50 : vector<16x64xf32>
    %cst_34 = arith.constant 1.000000e+00 : f32
    %54 = vector.broadcast %cst_34 : f32 to vector<16x64xf32>
    %55 = arith.subf %53, %54 : vector<16x64xf32>
    %56 = arith.select %52, %50, %55 : vector<16x64xi1>, vector<16x64xf32>
    %c272 = arith.constant 272 : index
    %c0_35 = arith.constant 0 : index
    %57 = vector.load %arg3[%c272, %c0_35] : memref<416x128xf32, #tpu.memory_space<vmem>>, vector<64x64xf32>
    %cst_36 = arith.constant dense<0.000000e+00> : vector<16x64xf32>
    %58 = tpu.matmul %56, %57, %cst_36 {dimension_numbers = #tpu.dot_dimension_numbers<[1], [0], [0], [1], [0, 0, 1, 1], [], []>} : vector<16x64xf32>, vector<64x64xf32>, vector<16x64xf32> -> vector<16x64xf32>
    %c336 = arith.constant 336 : index
    %c0_37 = arith.constant 0 : index
    %59 = vector.load %arg3[%c336, %c0_37] : memref<416x128xf32, #tpu.memory_space<vmem>>, vector<1x64xf32>
    %60 = vector.broadcast %59 : vector<1x64xf32> to vector<16x64xf32>
    %61 = arith.addf %58, %60 : vector<16x64xf32>
    %cst_38 = arith.constant 0.000000e+00 : f32
    %62 = vector.broadcast %cst_38 : f32 to vector<16x64xf32>
    %63 = arith.cmpf ogt, %61, %62 : vector<16x64xf32>
    %64 = math.exp %61 : vector<16x64xf32>
    %cst_39 = arith.constant 1.000000e+00 : f32
    %65 = vector.broadcast %cst_39 : f32 to vector<16x64xf32>
    %66 = arith.subf %64, %65 : vector<16x64xf32>
    %67 = arith.select %63, %61, %66 : vector<16x64xi1>, vector<16x64xf32>
    %c344 = arith.constant 344 : index
    %c0_40 = arith.constant 0 : index
    %68 = vector.load %arg3[%c344, %c0_40] : memref<416x128xf32, #tpu.memory_space<vmem>>, vector<64x32xf32>
    %cst_41 = arith.constant dense<0.000000e+00> : vector<16x32xf32>
    %69 = tpu.matmul %67, %68, %cst_41 {dimension_numbers = #tpu.dot_dimension_numbers<[1], [0], [0], [1], [0, 0, 1, 1], [], []>} : vector<16x64xf32>, vector<64x32xf32>, vector<16x32xf32> -> vector<16x32xf32>
    %c408 = arith.constant 408 : index
    %c0_42 = arith.constant 0 : index
    %70 = vector.load %arg3[%c408, %c0_42] : memref<416x128xf32, #tpu.memory_space<vmem>>, vector<1x32xf32>
    %71 = vector.broadcast %70 : vector<1x32xf32> to vector<16x32xf32>
    %72 = arith.addf %69, %71 : vector<16x32xf32>
    %c0_43 = arith.constant 0 : index
    %c0_44 = arith.constant 0 : index
    %73 = vector.load %arg4[%c0_43, %c0_44] : memref<16x32xf32, #tpu.memory_space<vmem>>, vector<16x32xf32>
    tpu.vector_store %arg4[%c0_43, %c0_44], %72 {strides = array<i32>} : memref<16x32xf32, #tpu.memory_space<vmem>>, vector<16x32xf32>,
    return
  }
}

</mosaic_0001>

<llo_original>
// kernel: tpu_custom_call.1
$region0: #{tpu_custom_call.1}
  #allocation0 [shape = 'u32[]', space=smem, size = 0x4, offset = 0x4, fixed_abs, tag = 'smem constant byte address 0x4 - core index']
  #allocation1 [shape = 'u32[144,128]{1,0:T(1,128)}', space=vmem, size = 0x12000, scoped, tag = 'internal scratch']
  %s0 = inlined_call_operand.vmem [shape: f32[128,4], index: 0, kind: input, shape index: {}]
  %s1 = inlined_call_operand.vmem [shape: f32[16,4], index: 1, kind: input, shape index: {}]
  %s2 = inlined_call_operand.vmem [shape: f32[128,1], index: 2, kind: input, shape index: {}]
  %s3 = inlined_call_operand.hbm [shape: f32[416,128], index: 3, kind: input, shape index: {}]
  %s4 = inlined_call_operand.hbm [shape: f32[16,32], index: 4, kind: output, shape index: {0}]
  %s5 = inlined_call_operand.vmem [shape: f32[128,32], index: 5, kind: output, shape index: {1}]
  %6 = xla_tuple %s4, %s5
  %s7 = sld [smem:[#allocation0]]
  $region38: #{tpu_custom_call.1} parent=0
    _
  %s9 = ssub.s32 1, %s7
  %s10 = scalar_select 0, %s9, %s7
  $region1: #{tpu_custom_call.1} parent=0
    #allocation2 [shape = 'u8[212992]{0}', space=vmem, size = 0x34000, scoped, tag = 'input window, operand 3, single buffered']
    #allocation3 [shape = 's32[1]{0}', space=sflag, size = 0x4, scoped, tag = 'scoped memory for tpu_custom_call.1']
    #allocation4 [shape = 's32[1]{0}', space=sflag, size = 0x4, scoped, tag = 'scoped memory for tpu_custom_call.1']
    #allocation5 [shape = 'u8[8192]{0}', space=vmem, size = 0x2000, scoped, tag = 'output window, operand 0, single buffered']
    %11 = vsyncpa [#allocation3], 0
    %12 = vsyncpa [#allocation4], 0
    // Predicated region
    $region2: #{tpu_custom_call.1} parent=1 // pred_check
      _
    $region3: #{tpu_custom_call.1} parent=1 // pred_check_branch
      %14 = sbr.rel (0) target = $region5
    $region4: #{tpu_custom_call.1} parent=1 // pred_region
      _
    $region5: #{tpu_custom_call.1} parent=1 // pred_fallthru
      _
    // Predicated region
    $region6: #{tpu_custom_call.1} parent=1 // pred_check
      _
    $region7: #{tpu_custom_call.1} parent=1 // pred_check_branch
      %16 = sbr.rel (0) target = $region9
    $region8: #{tpu_custom_call.1} parent=1 // pred_region
      _
    $region9: #{tpu_custom_call.1} parent=1 // pred_fallthru
      _
    // Predicated region
    $region10: #{tpu_custom_call.1} parent=1 // pred_check
      _
    $region11: #{tpu_custom_call.1} parent=1 // pred_check_branch
      %18 = sbr.rel (0) target = $region13
    $region12: #{tpu_custom_call.1} parent=1 // pred_region
      _
    $region13: #{tpu_custom_call.1} parent=1 // pred_fallthru
      _
    // Predicated region
    $region14: #{tpu_custom_call.1} parent=1 // pred_check
      _
    $region15: #{tpu_custom_call.1} parent=1 // pred_check_branch
      %20 = sbr.rel (0) target = $region17
    $region16: #{tpu_custom_call.1} parent=1 // pred_region
      %s22 = ssub.s32 6656, 6656
      %23 = vsyncadd [#allocation3], %s22
      %s24 = sshll.u32 [#allocation2], 4
      %s25 = int_to_ptr.vmem [resolvable:$true] %s24
      %30 = dma.hbm_to_vmem [thread:$0]  %s3, 6656, %s25, [#allocation3], 128, 128, 8
    $region17: #{tpu_custom_call.1} parent=1 // pred_fallthru
      _
    // Predicated region
    $region18: #{tpu_custom_call.1} parent=1 // pred_check
      _
    $region19: #{tpu_custom_call.1} parent=1 // pred_check_branch
      %32 = sbr.rel (0) target = $region21
    $region20: #{tpu_custom_call.1} parent=1 // pred_region
      %33 = dma.done [#allocation3], 6656
    $region21: #{tpu_custom_call.1} parent=1 // pred_fallthru
      _
    %v34 = vld [vmem:[%s0] sm:$0xff]
    %v35 = vld [vmem:[%s0 + $0x8] sm:$0xff]
    %v36 = vld [vmem:[%s0 + $0x10] sm:$0xff]
    %v37 = vld [vmem:[%s0 + $0x18] sm:$0xff]
    %v38 = vld [vmem:[%s0 + $0x20] sm:$0xff]
    %v39 = vld [vmem:[%s0 + $0x28] sm:$0xff]
    %v40 = vld [vmem:[%s0 + $0x30] sm:$0xff]
    %v41 = vld [vmem:[%s0 + $0x38] sm:$0xff]
    %v42 = vld [vmem:[%s0 + $0x40] sm:$0xff]
    %v43 = vld [vmem:[%s0 + $0x48] sm:$0xff]
    %v44 = vld [vmem:[%s0 + $0x50] sm:$0xff]
    %v45 = vld [vmem:[%s0 + $0x58] sm:$0xff]
    %v46 = vld [vmem:[%s0 + $0x60] sm:$0xff]
    %v47 = vld [vmem:[%s0 + $0x68] sm:$0xff]
    %v48 = vld [vmem:[%s0 + $0x70] sm:$0xff]
    %v49 = vld [vmem:[%s0 + $0x78] sm:$0xff]
    %v50 = vld [vmem:[%s1] sm:$0xff]
    %v51 = vld [vmem:[%s1 + $0x8] sm:$0xff]
    %v52 = vld [vmem:[%s2] sm:$0xff]
    %v53 = vld [vmem:[%s2 + $0x8] sm:$0xff]
    %v54 = vld [vmem:[%s2 + $0x10] sm:$0xff]
    %v55 = vld [vmem:[%s2 + $0x18] sm:$0xff]
    %v56 = vld [vmem:[%s2 + $0x20] sm:$0xff]
    %v57 = vld [vmem:[%s2 + $0x28] sm:$0xff]
    %v58 = vld [vmem:[%s2 + $0x30] sm:$0xff]
    %v59 = vld [vmem:[%s2 + $0x38] sm:$0xff]
    %v60 = vld [vmem:[%s2 + $0x40] sm:$0xff]
    %v61 = vld [vmem:[%s2 + $0x48] sm:$0xff]
    %v62 = vld [vmem:[%s2 + $0x50] sm:$0xff]
    %v63 = vld [vmem:[%s2 + $0x58] sm:$0xff]
    %v64 = vld [vmem:[%s2 + $0x60] sm:$0xff]
    %v65 = vld [vmem:[%s2 + $0x68] sm:$0xff]
    %v66 = vld [vmem:[%s2 + $0x70] sm:$0xff]
    %v67 = vld [vmem:[%s2 + $0x78] sm:$0xff]
    %v68 = vld [vmem:[#allocation2 + $0x8] sm:$0xf]
    %vm69 = vcmask 31744
    %v71 = vsel %vm69, %v50, 0
    %v74 = vsel %vm69, %v51, 0
    %vm76 = vcmask 1043456
    %v78 = vsel %vm76, %v68, 0
    %80 = vmatprep.subr.mxu0 0.0
    %81 = vmatpush1.msra.mxu0 %v78
    %82 = vmatprep.subr.mxu0 0.0
    %83 = vmatpush1.msra.mxu0 0.0
    %84 = vmatprep.subr.mxu0 0.0
    %85 = vmatpush1.msra.mxu0 0.0
    %86 = vmatprep.subr.mxu0 0.0
    %87 = vmatpush1.msra.mxu0 0.0
    %88 = vmatprep.subr.mxu0 0.0
    %89 = vmatpush1.msra.mxu0 0.0
    %90 = vmatprep.subr.mxu0 0.0
    %91 = vmatpush1.msra.mxu0 0.0
    %92 = vmatprep.subr.mxu0 0.0
    %93 = vmatpush1.msra.mxu0 0.0
    %94 = vmatprep.subr.mxu0 0.0
    %95 = vmatpush1.msra.mxu0 0.0
    %96 = vmatprep.subr.mxu0 0.0
    %97 = vmatpush1.msra.mxu0 0.0
    %98 = vmatprep.subr.mxu0 0.0
    %99 = vmatpush1.msra.mxu0 0.0
    %100 = vmatprep.subr.mxu0 0.0
    %101 = vmatpush1.msra.mxu0 0.0
    %102 = vmatprep.subr.mxu0 0.0
    %103 = vmatpush1.msra.mxu0 0.0
    %104 = vmatprep.subr.mxu0 0.0
    %105 = vmatpush1.msra.mxu0 0.0
    %106 = vmatprep.subr.mxu0 0.0
    %107 = vmatpush1.msra.mxu0 0.0
    %108 = vmatprep.subr.mxu0 0.0
    %109 = vmatpush1.msra.mxu0 0.0
    %110 = vmatprep.subr.mxu0 0.0
    %111 = vmatpush1.msra.mxu0 0.0
    %112 = vmatprep.subr.mxu0 0.0
    %113 = vmatpush1.msra.mxu0 0.0
    %114 = vmatprep.subr.mxu0 0.0
    %115 = vmatpush1.msra.mxu0 0.0
    %116 = vmatprep.subr.mxu0 0.0
    %117 = vmatpush1.msra.mxu0 0.0
    %118 = vmatprep.subr.mxu0 0.0
    %119 = vmatpush1.msra.mxu0 0.0
    %120 = vmatprep.subr.mxu0 0.0
    %121 = vmatpush1.msra.mxu0 0.0
    %122 = vmatprep.subr.mxu0 0.0
    %123 = vmatpush1.msra.mxu0 0.0
    %124 = vmatprep.subr.mxu0 0.0
    %125 = vmatpush1.msra.mxu0 0.0
    %126 = vmatprep.subr.mxu0 0.0
    %127 = vmatpush1.msra.mxu0 0.0
    %128 = vmatprep.subr.mxu0 0.0
    %129 = vmatpush1.msra.mxu0 0.0
    %130 = vmatprep.subr.mxu0 0.0
    %131 = vmatpush1.msra.mxu0 0.0
    %132 = vmatprep.subr.mxu0 0.0
    %133 = vmatpush1.msra.mxu0 0.0
    %134 = vmatprep.subr.mxu0 0.0
    %135 = vmatpush1.msra.mxu0 0.0
    %136 = vmatprep.subr.mxu0 0.0
    %137 = vmatpush1.msra.mxu0 0.0
    %138 = vmatprep.subr.mxu0 0.0
    %139 = vmatpush1.msra.mxu0 0.0
    %140 = vmatprep.subr.mxu0 0.0
    %141 = vmatpush1.msra.mxu0 0.0
    %142 = vmatprep.subr.mxu0 0.0
    %143 = vmatpush1.msra.mxu0 0.0
    %144 = vmatprep.mubr.f32.mxu0 0.0
    %145 = vmatmul.mubr.f32.gmra.mrb[0].mxu0 %v71
    %v146 = vpop.f32.mrb[0].mxu0
    %v147 = vadd.f32 0.0, %v146
    %v148 = vpop.f32.mrb[0].mxu0
    %149 = vmatprep.mubr.f32.mxu0 0.0
    %150 = vmatmul.mubr.f32.gmra.mrb[0].mxu0 %v74
    %v151 = vpop.f32.mrb[0].mxu0
    %v152 = vadd.f32 0.0, %v151
    %v153 = vpop.f32.mrb[0].mxu0
    %154 = vdwg.mxu0
    %v155 = vld [vmem:[#allocation2 + $0x10] sm:$0xf]
    %v157 = vsel %vm76, %v155, 0
    %159 = vmatprep.subr.mxu0 0.0
    %160 = vmatpush1.msra.mxu0 %v157
    %161 = vmatprep.subr.mxu0 0.0
    %162 = vmatpush1.msra.mxu0 0.0
    %163 = vmatprep.subr.mxu0 0.0
    %164 = vmatpush1.msra.mxu0 0.0
    %165 = vmatprep.subr.mxu0 0.0
    %166 = vmatpush1.msra.mxu0 0.0
    %167 = vmatprep.subr.mxu0 0.0
    %168 = vmatpush1.msra.mxu0 0.0
    %169 = vmatprep.subr.mxu0 0.0
    %170 = vmatpush1.msra.mxu0 0.0
    %171 = vmatprep.subr.mxu0 0.0
    %172 = vmatpush1.msra.mxu0 0.0
    %173 = vmatprep.subr.mxu0 0.0
    %174 = vmatpush1.msra.mxu0 0.0
    %175 = vmatprep.subr.mxu0 0.0
    %176 = vmatpush1.msra.mxu0 0.0
    %177 = vmatprep.subr.mxu0 0.0
    %178 = vmatpush1.msra.mxu0 0.0
    %179 = vmatprep.subr.mxu0 0.0
    %180 = vmatpush1.msra.mxu0 0.0
    %181 = vmatprep.subr.mxu0 0.0
    %182 = vmatpush1.msra.mxu0 0.0
    %183 = vmatprep.subr.mxu0 0.0
    %184 = vmatpush1.msra.mxu0 0.0
    %185 = vmatprep.subr.mxu0 0.0
    %186 = vmatpush1.msra.mxu0 0.0
    %187 = vmatprep.subr.mxu0 0.0
    %188 = vmatpush1.msra.mxu0 0.0
    %189 = vmatprep.subr.mxu0 0.0
    %190 = vmatpush1.msra.mxu0 0.0
    %191 = vmatprep.subr.mxu0 0.0
    %192 = vmatpush1.msra.mxu0 0.0
    %193 = vmatprep.subr.mxu0 0.0
    %194 = vmatpush1.msra.mxu0 0.0
    %195 = vmatprep.subr.mxu0 0.0
    %196 = vmatpush1.msra.mxu0 0.0
    %197 = vmatprep.subr.mxu0 0.0
    %198 = vmatpush1.msra.mxu0 0.0
    %199 = vmatprep.subr.mxu0 0.0
    %200 = vmatpush1.msra.mxu0 0.0
    %201 = vmatprep.subr.mxu0 0.0
    %202 = vmatpush1.msra.mxu0 0.0
    %203 = vmatprep.subr.mxu0 0.0
    %204 = vmatpush1.msra.mxu0 0.0
    %205 = vmatprep.subr.mxu0 0.0
    %206 = vmatpush1.msra.mxu0 0.0
    %207 = vmatprep.subr.mxu0 0.0
    %208 = vmatpush1.msra.mxu0 0.0
    %209 = vmatprep.subr.mxu0 0.0
    %210 = vmatpush1.msra.mxu0 0.0
    %211 = vmatprep.subr.mxu0 0.0
    %212 = vmatpush1.msra.mxu0 0.0
    %213 = vmatprep.subr.mxu0 0.0
    %214 = vmatpush1.msra.mxu0 0.0
    %215 = vmatprep.subr.mxu0 0.0
    %216 = vmatpush1.msra.mxu0 0.0
    %217 = vmatprep.subr.mxu0 0.0
    %218 = vmatpush1.msra.mxu0 0.0
    %219 = vmatprep.subr.mxu0 0.0
    %220 = vmatpush1.msra.mxu0 0.0
    %221 = vmatprep.subr.mxu0 0.0
    %222 = vmatpush1.msra.mxu0 0.0
    %223 = vmatprep.mubr.f32.mxu0 0.0
    %224 = vmatmul.mubr.f32.gmra.mrb[0].mxu0 %v71
    %v225 = vpop.f32.mrb[0].mxu0
    %v226 = vadd.f32 0.0, %v225
    %v227 = vpop.f32.mrb[0].mxu0
    %228 = vmatprep.mubr.f32.mxu0 0.0
    %229 = vmatmul.mubr.f32.gmra.mrb[0].mxu0 %v74
    %v230 = vpop.f32.mrb[0].mxu0
    %v231 = vadd.f32 0.0, %v230
    %v232 = vpop.f32.mrb[0].mxu0
    %233 = vdwg.mxu0
    %v234 = vld [vmem:[#allocation2 + $0x100] sm:$0xf]
    %v236 = vsel %vm76, %v234, 0
    %238 = vmatprep.subr.mxu0 0.0
    %239 = vmatpush1.msra.mxu0 %v236
    %240 = vmatprep.subr.mxu0 0.0
    %241 = vmatpush1.msra.mxu0 0.0
    %242 = vmatprep.subr.mxu0 0.0
    %243 = vmatpush1.msra.mxu0 0.0
    %244 = vmatprep.subr.mxu0 0.0
    %245 = vmatpush1.msra.mxu0 0.0
    %246 = vmatprep.subr.mxu0 0.0
    %247 = vmatpush1.msra.mxu0 0.0
    %248 = vmatprep.subr.mxu0 0.0
    %249 = vmatpush1.msra.mxu0 0.0
    %250 = vmatprep.subr.mxu0 0.0
    %251 = vmatpush1.msra.mxu0 0.0
    %252 = vmatprep.subr.mxu0 0.0
    %253 = vmatpush1.msra.mxu0 0.0
    %254 = vmatprep.subr.mxu0 0.0
    %255 = vmatpush1.msra.mxu0 0.0
    %256 = vmatprep.subr.mxu0 0.0
    %257 = vmatpush1.msra.mxu0 0.0
    %258 = vmatprep.subr.mxu0 0.0
    %259 = vmatpush1.msra.mxu0 0.0
    %260 = vmatprep.subr.mxu0 0.0
    %261 = vmatpush1.msra.mxu0 0.0
    %262 = vmatprep.subr.mxu0 0.0
    %263 = vmatpush1.msra.mxu0 0.0
    %264 = vmatprep.subr.mxu0 0.0
    %265 = vmatpush1.msra.mxu0 0.0
    %266 = vmatprep.subr.mxu0 0.0
    %267 = vmatpush1.msra.mxu0 0.0
    %268 = vmatprep.subr.mxu0 0.0
    %269 = vmatpush1.msra.mxu0 0.0
    %270 = vmatprep.subr.mxu0 0.0
    %271 = vmatpush1.msra.mxu0 0.0
    %272 = vmatprep.subr.mxu0 0.0
    %273 = vmatpush1.msra.mxu0 0.0
    %274 = vmatprep.subr.mxu0 0.0
    %275 = vmatpush1.msra.mxu0 0.0
    %276 = vmatprep.subr.mxu0 0.0
    %277 = vmatpush1.msra.mxu0 0.0
    %278 = vmatprep.subr.mxu0 0.0
    %279 = vmatpush1.msra.mxu0 0.0
    %280 = vmatprep.subr.mxu0 0.0
    %281 = vmatpush1.msra.mxu0 0.0
    %282 = vmatprep.subr.mxu0 0.0
    %283 = vmatpush1.msra.mxu0 0.0
    %284 = vmatprep.subr.mxu0 0.0
    %285 = vmatpush1.msra.mxu0 0.0
    %286 = vmatprep.subr.mxu0 0.0
    %287 = vmatpush1.msra.mxu0 0.0
    %288 = vmatprep.subr.mxu0 0.0
    %289 = vmatpush1.msra.mxu0 0.0
    %290 = vmatprep.subr.mxu0 0.0
    %291 = vmatpush1.msra.mxu0 0.0
    %292 = vmatprep.subr.mxu0 0.0
    %293 = vmatpush1.msra.mxu0 0.0
    %294 = vmatprep.subr.mxu0 0.0
    %295 = vmatpush1.msra.mxu0 0.0
    %296 = vmatprep.subr.mxu0 0.0
    %297 = vmatpush1.msra.mxu0 0.0
    %298 = vmatprep.subr.mxu0 0.0
    %299 = vmatpush1.msra.mxu0 0.0
    %300 = vmatprep.subr.mxu0 0.0
    %301 = vmatpush1.msra.mxu0 0.0
    %302 = vmatprep.mubr.f32.mxu0 0.0
    %303 = vmatmul.mubr.f32.gmra.mrb[0].mxu0 %v71
    %v304 = vpop.f32.mrb[0].mxu0
    %v305 = vadd.f32 0.0, %v304
    %v306 = vpop.f32.mrb[0].mxu0
    %307 = vmatprep.mubr.f32.mxu0 0.0
    %308 = vmatmul.mubr.f32.gmra.mrb[0].mxu0 %v74
    %v309 = vpop.f32.mrb[0].mxu0
    %v310 = vadd.f32 0.0, %v309
    %v311 = vpop.f32.mrb[0].mxu0
    %312 = vdwg.mxu0
    %v313 = vld [vmem:[#allocation2 + $0x50] sm:$0xff]
    %v314 = vld [vmem:[#allocation2 + $0x58] sm:$0xff]
    %v315 = vld [vmem:[#allocation2 + $0x60] sm:$0xff]
    %v316 = vld [vmem:[#allocation2 + $0x68] sm:$0xff]
    %v317 = vld [vmem:[#allocation2 + $0x70] sm:$0xff]
    %v318 = vld [vmem:[#allocation2 + $0x78] sm:$0xff]
    %v319 = vld [vmem:[#allocation2 + $0x80] sm:$0xff]
    %v320 = vld [vmem:[#allocation2 + $0x88] sm:$0xff]
    %v321 = vld [vmem:[#allocation2 + $0x90] sm:$0xff]
    %v322 = vld [vmem:[#allocation2 + $0x98] sm:$0xff]
    %v323 = vld [vmem:[#allocation2 + $0xa0] sm:$0xff]
    %v324 = vld [vmem:[#allocation2 + $0xa8] sm:$0xff]
    %v325 = vld [vmem:[#allocation2 + $0xb0] sm:$0xff]
    %v326 = vld [vmem:[#allocation2 + $0xb8] sm:$0xff]
    %v327 = vld [vmem:[#allocation2 + $0xc0] sm:$0xff]
    %v328 = vld [vmem:[#allocation2 + $0xc8] sm:$0xff]
    %vm329 = vcmask 261120
    %v331 = vsel %vm329, %v313, 0
    %v334 = vsel %vm329, %v314, 0
    %v337 = vsel %vm329, %v315, 0
    %v340 = vsel %vm329, %v316, 0
    %v343 = vsel %vm329, %v317, 0
    %v346 = vsel %vm329, %v318, 0
    %v349 = vsel %vm329, %v319, 0
    %v352 = vsel %vm329, %v320, 0
    %v355 = vsel %vm329, %v321, 0
    %v358 = vsel %vm329, %v322, 0
    %v361 = vsel %vm329, %v323, 0
    %v364 = vsel %vm329, %v324, 0
    %v367 = vsel %vm329, %v325, 0
    %v370 = vsel %vm329, %v326, 0
    %v373 = vsel %vm329, %v327, 0
    %v376 = vsel %vm329, %v328, 0
    %378 = vmatprep.subr.mxu0 0.0
    %379 = vmatpush1.msra.mxu0 %v147
    %380 = vmatprep.subr.mxu0 0.0
    %381 = vmatpush1.msra.mxu0 %v152
    %382 = vmatprep.subr.mxu0 0.0
    %383 = vmatpush1.msra.mxu0 %v226
    %384 = vmatprep.subr.mxu0 0.0
    %385 = vmatpush1.msra.mxu0 %v231
    %386 = vmatprep.subr.mxu0 0.0
    %387 = vmatpush1.msra.mxu0 0.0
    %388 = vmatprep.subr.mxu0 0.0
    %389 = vmatpush1.msra.mxu0 0.0
    %390 = vmatprep.subr.mxu0 0.0
    %391 = vmatpush1.msra.mxu0 0.0
    %392 = vmatprep.subr.mxu0 0.0
    %393 = vmatpush1.msra.mxu0 0.0
    %394 = vmatprep.subr.mxu0 0.0
    %395 = vmatpush1.msra.mxu0 0.0
    %396 = vmatprep.subr.mxu0 0.0
    %397 = vmatpush1.msra.mxu0 0.0
    %398 = vmatprep.subr.mxu0 0.0
    %399 = vmatpush1.msra.mxu0 0.0
    %400 = vmatprep.subr.mxu0 0.0
    %401 = vmatpush1.msra.mxu0 0.0
    %402 = vmatprep.subr.mxu0 0.0
    %403 = vmatpush1.msra.mxu0 0.0
    %404 = vmatprep.subr.mxu0 0.0
    %405 = vmatpush1.msra.mxu0 0.0
    %406 = vmatprep.subr.mxu0 0.0
    %407 = vmatpush1.msra.mxu0 0.0
    %408 = vmatprep.subr.mxu0 0.0
    %409 = vmatpush1.msra.mxu0 0.0
    %410 = vmatprep.subr.mxu0 0.0
    %411 = vmatpush1.msra.mxu0 0.0
    %412 = vmatprep.subr.mxu0 0.0
    %413 = vmatpush1.msra.mxu0 0.0
    %414 = vmatprep.subr.mxu0 0.0
    %415 = vmatpush1.msra.mxu0 0.0
    %416 = vmatprep.subr.mxu0 0.0
    %417 = vmatpush1.msra.mxu0 0.0
    %418 = vmatprep.subr.mxu0 0.0
    %419 = vmatpush1.msra.mxu0 0.0
    %420 = vmatprep.subr.mxu0 0.0
    %421 = vmatpush1.msra.mxu0 0.0
    %422 = vmatprep.subr.mxu0 0.0
    %423 = vmatpush1.msra.mxu0 0.0
    %424 = vmatprep.subr.mxu0 0.0
    %425 = vmatpush1.msra.mxu0 0.0
    %426 = vmatprep.subr.mxu0 0.0
    %427 = vmatpush1.msra.mxu0 0.0
    %428 = vmatprep.subr.mxu0 0.0
    %429 = vmatpush1.msra.mxu0 0.0
    %430 = vmatprep.subr.mxu0 0.0
    %431 = vmatpush1.msra.mxu0 0.0
    %432 = vmatprep.subr.mxu0 0.0
    %433 = vmatpush1.msra.mxu0 0.0
    %434 = vmatprep.subr.mxu0 0.0
    %435 = vmatpush1.msra.mxu0 0.0
    %436 = vmatprep.subr.mxu0 0.0
    %437 = vmatpush1.msra.mxu0 0.0
    %438 = vmatprep.subr.mxu0 0.0
    %439 = vmatpush1.msra.mxu0 0.0
    %440 = vmatprep.subr.mxu0 0.0
    %441 = vmatpush1.msra.mxu0 0.0
    %442 = vmatprep.mubr.f32.mxu0 0.0
    %443 = vmatmul.mubr.f32.gmra.mrb[0].mxu0 %v331
    %v444 = vpop.f32.mrb[0].mxu0
    %v445 = vadd.f32 0.0, %v444
    %v446 = vpop.f32.mrb[0].mxu0
    %447 = vmatprep.mubr.f32.mxu0 0.0
    %448 = vmatmul.mubr.f32.gmra.mrb[0].mxu0 %v334
    %v449 = vpop.f32.mrb[0].mxu0
    %v450 = vadd.f32 0.0, %v449
    %v451 = vpop.f32.mrb[0].mxu0
    %452 = vmatprep.mubr.f32.mxu0 0.0
    %453 = vmatmul.mubr.f32.gmra.mrb[0].mxu0 %v337
    %v454 = vpop.f32.mrb[0].mxu0
    %v455 = vadd.f32 0.0, %v454
    %v456 = vpop.f32.mrb[0].mxu0
    %457 = vmatprep.mubr.f32.mxu0 0.0
    %458 = vmatmul.mubr.f32.gmra.mrb[0].mxu0 %v340
    %v459 = vpop.f32.mrb[0].mxu0
    %v460 = vadd.f32 0.0, %v459
    %v461 = vpop.f32.mrb[0].mxu0
    %462 = vmatprep.mubr.f32.mxu0 0.0
    %463 = vmatmul.mubr.f32.gmra.mrb[0].mxu0 %v343
    %v464 = vpop.f32.mrb[0].mxu0
    %v465 = vadd.f32 0.0, %v464
    %v466 = vpop.f32.mrb[0].mxu0
    %467 = vmatprep.mubr.f32.mxu0 0.0
    %468 = vmatmul.mubr.f32.gmra.mrb[0].mxu0 %v346
    %v469 = vpop.f32.mrb[0].mxu0
    %v470 = vadd.f32 0.0, %v469
    %v471 = vpop.f32.mrb[0].mxu0
    %472 = vmatprep.mubr.f32.mxu0 0.0
    %473 = vmatmul.mubr.f32.gmra.mrb[0].mxu0 %v349
    %v474 = vpop.f32.mrb[0].mxu0
    %v475 = vadd.f32 0.0, %v474
    %v476 = vpop.f32.mrb[0].mxu0
    %477 = vmatprep.mubr.f32.mxu0 0.0
    %478 = vmatmul.mubr.f32.gmra.mrb[0].mxu0 %v352
    %v479 = vpop.f32.mrb[0].mxu0
    %v480 = vadd.f32 0.0, %v479
    %v481 = vpop.f32.mrb[0].mxu0
    %482 = vmatprep.mubr.f32.mxu0 0.0
    %483 = vmatmul.mubr.f32.gmra.mrb[0].mxu0 %v355
    %v484 = vpop.f32.mrb[0].mxu0
    %v485 = vadd.f32 0.0, %v484
    %v486 = vpop.f32.mrb[0].mxu0
    %487 = vmatprep.mubr.f32.mxu0 0.0
    %488 = vmatmul.mubr.f32.gmra.mrb[0].mxu0 %v358
    %v489 = vpop.f32.mrb[0].mxu0
    %v490 = vadd.f32 0.0, %v489
    %v491 = vpop.f32.mrb[0].mxu0
    %492 = vmatprep.mubr.f32.mxu0 0.0
    %493 = vmatmul.mubr.f32.gmra.mrb[0].mxu0 %v361
    %v494 = vpop.f32.mrb[0].mxu0
    %v495 = vadd.f32 0.0, %v494
    %v496 = vpop.f32.mrb[0].mxu0
    %497 = vmatprep.mubr.f32.mxu0 0.0
    %498 = vmatmul.mubr.f32.gmra.mrb[0].mxu0 %v364
    %v499 = vpop.f32.mrb[0].mxu0
    %v500 = vadd.f32 0.0, %v499
    %v501 = vpop.f32.mrb[0].mxu0
    %502 = vmatprep.mubr.f32.mxu0 0.0
    %503 = vmatmul.mubr.f32.gmra.mrb[0].mxu0 %v367
    %v504 = vpop.f32.mrb[0].mxu0
    %v505 = vadd.f32 0.0, %v504
    %v506 = vpop.f32.mrb[0].mxu0
    %507 = vmatprep.mubr.f32.mxu0 0.0
    %508 = vmatmul.mubr.f32.gmra.mrb[0].mxu0 %v370
    %v509 = vpop.f32.mrb[0].mxu0
    %v510 = vadd.f32 0.0, %v509
    %v511 = vpop.f32.mrb[0].mxu0
    %512 = vmatprep.mubr.f32.mxu0 0.0
    %513 = vmatmul.mubr.f32.gmra.mrb[0].mxu0 %v373
    %v514 = vpop.f32.mrb[0].mxu0
    %v515 = vadd.f32 0.0, %v514
    %v516 = vpop.f32.mrb[0].mxu0
    %517 = vmatprep.mubr.f32.mxu0 0.0
    %518 = vmatmul.mubr.f32.gmra.mrb[0].mxu0 %v376
    %v519 = vpop.f32.mrb[0].mxu0
    %v520 = vadd.f32 0.0, %v519
    %v521 = vpop.f32.mrb[0].mxu0
    %522 = vdwg.mxu0
    %v523 = vld [vmem:[#allocation2] sm:$0xf]
    %v525 = vsel %vm69, %v34, 0
    %v528 = vsel %vm69, %v35, 0
    %v531 = vsel %vm69, %v36, 0
    %v534 = vsel %vm69, %v37, 0
    %v537 = vsel %vm69, %v38, 0
    %v540 = vsel %vm69, %v39, 0
    %v543 = vsel %vm69, %v40, 0
    %v546 = vsel %vm69, %v41, 0
    %v549 = vsel %vm69, %v42, 0
    %v552 = vsel %vm69, %v43, 0
    %v555 = vsel %vm69, %v44, 0
    %v558 = vsel %vm69, %v45, 0
    %v561 = vsel %vm69, %v46, 0
    %v564 = vsel %vm69, %v47, 0
    %v567 = vsel %vm69, %v48, 0
    %v570 = vsel %vm69, %v49, 0
    %v573 = vsel %vm76, %v523, 0
    %575 = vmatprep.subr.mxu0 0.0
    %576 = vmatpush1.msra.mxu0 %v573
    %577 = vmatprep.subr.mxu0 0.0
    %578 = vmatpush1.msra.mxu0 0.0
    %579 = vmatprep.subr.mxu0 0.0
    %580 = vmatpush1.msra.mxu0 0.0
    %581 = vmatprep.subr.mxu0 0.0
    %582 = vmatpush1.msra.mxu0 0.0
    %583 = vmatprep.subr.mxu0 0.0
    %584 = vmatpush1.msra.mxu0 0.0
    %585 = vmatprep.subr.mxu0 0.0
    %586 = vmatpush1.msra.mxu0 0.0
    %587 = vmatprep.subr.mxu0 0.0
    %588 = vmatpush1.msra.mxu0 0.0
    %589 = vmatprep.subr.mxu0 0.0
    %590 = vmatpush1.msra.mxu0 0.0
    %591 = vmatprep.subr.mxu0 0.0
    %592 = vmatpush1.msra.mxu0 0.0
    %593 = vmatprep.subr.mxu0 0.0
    %594 = vmatpush1.msra.mxu0 0.0
    %595 = vmatprep.subr.mxu0 0.0
    %596 = vmatpush1.msra.mxu0 0.0
    %597 = vmatprep.subr.mxu0 0.0
    %598 = vmatpush1.msra.mxu0 0.0
    %599 = vmatprep.subr.mxu0 0.0
    %600 = vmatpush1.msra.mxu0 0.0
    %601 = vmatprep.subr.mxu0 0.0
    %602 = vmatpush1.msra.mxu0 0.0
    %603 = vmatprep.subr.mxu0 0.0
    %604 = vmatpush1.msra.mxu0 0.0
    %605 = vmatprep.subr.mxu0 0.0
    %606 = vmatpush1.msra.mxu0 0.0
    %607 = vmatprep.subr.mxu0 0.0
    %608 = vmatpush1.msra.mxu0 0.0
    %609 = vmatprep.subr.mxu0 0.0
    %610 = vmatpush1.msra.mxu0 0.0
    %611 = vmatprep.subr.mxu0 0.0
    %612 = vmatpush1.msra.mxu0 0.0
    %613 = vmatprep.subr.mxu0 0.0
    %614 = vmatpush1.msra.mxu0 0.0
    %615 = vmatprep.subr.mxu0 0.0
    %616 = vmatpush1.msra.mxu0 0.0
    %617 = vmatprep.subr.mxu0 0.0
    %618 = vmatpush1.msra.mxu0 0.0
    %619 = vmatprep.subr.mxu0 0.0
    %620 = vmatpush1.msra.mxu0 0.0
    %621 = vmatprep.subr.mxu0 0.0
    %622 = vmatpush1.msra.mxu0 0.0
    %623 = vmatprep.subr.mxu0 0.0
    %624 = vmatpush1.msra.mxu0 0.0
    %625 = vmatprep.subr.mxu0 0.0
    %626 = vmatpush1.msra.mxu0 0.0
    %627 = vmatprep.subr.mxu0 0.0
    %628 = vmatpush1.msra.mxu0 0.0
    %629 = vmatprep.subr.mxu0 0.0
    %630 = vmatpush1.msra.mxu0 0.0
    %631 = vmatprep.subr.mxu0 0.0
    %632 = vmatpush1.msra.mxu0 0.0
    %633 = vmatprep.subr.mxu0 0.0
    %634 = vmatpush1.msra.mxu0 0.0
    %635 = vmatprep.subr.mxu0 0.0
    %636 = vmatpush1.msra.mxu0 0.0
    %637 = vmatprep.subr.mxu0 0.0
    %638 = vmatpush1.msra.mxu0 0.0
    %639 = vmatprep.mubr.f32.mxu0 0.0
    %640 = vmatmul.mubr.f32.gmra.mrb[0].mxu0 %v525
    %v641 = vpop.f32.mrb[0].mxu0
    %v642 = vadd.f32 %v445, %v641
    %v643 = vpop.f32.mrb[0].mxu0
    %644 = vmatprep.mubr.f32.mxu0 0.0
    %645 = vmatmul.mubr.f32.gmra.mrb[0].mxu0 %v528
    %v646 = vpop.f32.mrb[0].mxu0
    %v647 = vadd.f32 %v450, %v646
    %v648 = vpop.f32.mrb[0].mxu0
    %649 = vmatprep.mubr.f32.mxu0 0.0
    %650 = vmatmul.mubr.f32.gmra.mrb[0].mxu0 %v531
    %v651 = vpop.f32.mrb[0].mxu0
    %v652 = vadd.f32 %v455, %v651
    %v653 = vpop.f32.mrb[0].mxu0
    %654 = vmatprep.mubr.f32.mxu0 0.0
    %655 = vmatmul.mubr.f32.gmra.mrb[0].mxu0 %v534
    %v656 = vpop.f32.mrb[0].mxu0
    %v657 = vadd.f32 %v460, %v656
    %v658 = vpop.f32.mrb[0].mxu0
    %659 = vmatprep.mubr.f32.mxu0 0.0
    %660 = vmatmul.mubr.f32.gmra.mrb[0].mxu0 %v537
    %v661 = vpop.f32.mrb[0].mxu0
    %v662 = vadd.f32 %v465, %v661
    %v663 = vpop.f32.mrb[0].mxu0
    %664 = vmatprep.mubr.f32.mxu0 0.0
    %665 = vmatmul.mubr.f32.gmra.mrb[0].mxu0 %v540
    %v666 = vpop.f32.mrb[0].mxu0
    %v667 = vadd.f32 %v470, %v666
    %v668 = vpop.f32.mrb[0].mxu0
    %669 = vmatprep.mubr.f32.mxu0 0.0
    %670 = vmatmul.mubr.f32.gmra.mrb[0].mxu0 %v543
    %v671 = vpop.f32.mrb[0].mxu0
    %v672 = vadd.f32 %v475, %v671
    %v673 = vpop.f32.mrb[0].mxu0
    %674 = vmatprep.mubr.f32.mxu0 0.0
    %675 = vmatmul.mubr.f32.gmra.mrb[0].mxu0 %v546
    %v676 = vpop.f32.mrb[0].mxu0
    %v677 = vadd.f32 %v480, %v676
    %v678 = vpop.f32.mrb[0].mxu0
    %679 = vmatprep.mubr.f32.mxu0 0.0
    %680 = vmatmul.mubr.f32.gmra.mrb[0].mxu0 %v549
    %v681 = vpop.f32.mrb[0].mxu0
    %v682 = vadd.f32 %v485, %v681
    %v683 = vpop.f32.mrb[0].mxu0
    %684 = vmatprep.mubr.f32.mxu0 0.0
    %685 = vmatmul.mubr.f32.gmra.mrb[0].mxu0 %v552
    %v686 = vpop.f32.mrb[0].mxu0
    %v687 = vadd.f32 %v490, %v686
    %v688 = vpop.f32.mrb[0].mxu0
    %689 = vmatprep.mubr.f32.mxu0 0.0
    %690 = vmatmul.mubr.f32.gmra.mrb[0].mxu0 %v555
    %v691 = vpop.f32.mrb[0].mxu0
    %v692 = vadd.f32 %v495, %v691
    %v693 = vpop.f32.mrb[0].mxu0
    %694 = vmatprep.mubr.f32.mxu0 0.0
    %695 = vmatmul.mubr.f32.gmra.mrb[0].mxu0 %v558
    %v696 = vpop.f32.mrb[0].mxu0
    %v697 = vadd.f32 %v500, %v696
    %v698 = vpop.f32.mrb[0].mxu0
    %699 = vmatprep.mubr.f32.mxu0 0.0
    %700 = vmatmul.mubr.f32.gmra.mrb[0].mxu0 %v561
    %v701 = vpop.f32.mrb[0].mxu0
    %v702 = vadd.f32 %v505, %v701
    %v703 = vpop.f32.mrb[0].mxu0
    %704 = vmatprep.mubr.f32.mxu0 0.0
    %705 = vmatmul.mubr.f32.gmra.mrb[0].mxu0 %v564
    %v706 = vpop.f32.mrb[0].mxu0
    %v707 = vadd.f32 %v510, %v706
    %v708 = vpop.f32.mrb[0].mxu0
    %709 = vmatprep.mubr.f32.mxu0 0.0
    %710 = vmatmul.mubr.f32.gmra.mrb[0].mxu0 %v567
    %v711 = vpop.f32.mrb[0].mxu0
    %v712 = vadd.f32 %v515, %v711
    %v713 = vpop.f32.mrb[0].mxu0
    %714 = vmatprep.mubr.f32.mxu0 0.0
    %715 = vmatmul.mubr.f32.gmra.mrb[0].mxu0 %v570
    %v716 = vpop.f32.mrb[0].mxu0
    %v717 = vadd.f32 %v520, %v716
    %v718 = vpop.f32.mrb[0].mxu0
    %719 = vdwg.mxu0
    %v720 = vld [vmem:[#allocation2 + $0x18] sm:$0x1]
    %v721 = vlaneseq
    %v722 = vshrl.u32 %v721, 7
    %v723 = vsub.s32 0, %v722
    %v724 = vrot.slane %v720, %v723
    %v725 = vadd.f32 %v642, %v724
    %v726 = vadd.f32 %v647, %v724
    %v727 = vadd.f32 %v652, %v724
    %v728 = vadd.f32 %v657, %v724
    %v729 = vadd.f32 %v662, %v724
    %v730 = vadd.f32 %v667, %v724
    %v731 = vadd.f32 %v672, %v724
    %v732 = vadd.f32 %v677, %v724
    %v733 = vadd.f32 %v682, %v724
    %v734 = vadd.f32 %v687, %v724
    %v735 = vadd.f32 %v692, %v724
    %v736 = vadd.f32 %v697, %v724
    %v737 = vadd.f32 %v702, %v724
    %v738 = vadd.f32 %v707, %v724
    %v739 = vadd.f32 %v712, %v724
    %v740 = vadd.f32 %v717, %v724
    %vm741 = vcmp.gt.f32.partialorder %v725, 0.0
    %vm742 = vcmp.gt.f32.partialorder %v726, 0.0
    %vm743 = vcmp.gt.f32.partialorder %v727, 0.0
    %vm744 = vcmp.gt.f32.partialorder %v728, 0.0
    %vm745 = vcmp.gt.f32.partialorder %v729, 0.0
    %vm746 = vcmp.gt.f32.partialorder %v730, 0.0
    %vm747 = vcmp.gt.f32.partialorder %v731, 0.0
    %vm748 = vcmp.gt.f32.partialorder %v732, 0.0
    %vm749 = vcmp.gt.f32.partialorder %v733, 0.0
    %vm750 = vcmp.gt.f32.partialorder %v734, 0.0
    %vm751 = vcmp.gt.f32.partialorder %v735, 0.0
    %vm752 = vcmp.gt.f32.partialorder %v736, 0.0
    %vm753 = vcmp.gt.f32.partialorder %v737, 0.0
    %vm754 = vcmp.gt.f32.partialorder %v738, 0.0
    %vm755 = vcmp.gt.f32.partialorder %v739, 0.0
    %vm756 = vcmp.gt.f32.partialorder %v740, 0.0
    %v757 = vmul.f32 %v725, 1.442695
    %v758 = vpow.pop %v757
    %v759 = vmul.f32 %v726, 1.442695
    %v760 = vpow.pop %v759
    %v761 = vmul.f32 %v727, 1.442695
    %v762 = vpow.pop %v761
    %v763 = vmul.f32 %v728, 1.442695
    %v764 = vpow.pop %v763
    %v765 = vmul.f32 %v729, 1.442695
    %v766 = vpow.pop %v765
    %v767 = vmul.f32 %v730, 1.442695
    %v768 = vpow.pop %v767
    %v769 = vmul.f32 %v731, 1.442695
    %v770 = vpow.pop %v769
    %v771 = vmul.f32 %v732, 1.442695
    %v772 = vpow.pop %v771
    %v773 = vmul.f32 %v733, 1.442695
    %v774 = vpow.pop %v773
    %v775 = vmul.f32 %v734, 1.442695
    %v776 = vpow.pop %v775
    %v777 = vmul.f32 %v735, 1.442695
    %v778 = vpow.pop %v777
    %v779 = vmul.f32 %v736, 1.442695
    %v780 = vpow.pop %v779
    %v781 = vmul.f32 %v737, 1.442695
    %v782 = vpow.pop %v781
    %v783 = vmul.f32 %v738, 1.442695
    %v784 = vpow.pop %v783
    %v785 = vmul.f32 %v739, 1.442695
    %v786 = vpow.pop %v785
    %v787 = vmul.f32 %v740, 1.442695
    %v788 = vpow.pop %v787
    %v789 = vsub.f32 %v758, 1.0
    %v790 = vsub.f32 %v760, 1.0
    %v791 = vsub.f32 %v762, 1.0
    %v792 = vsub.f32 %v764, 1.0
    %v793 = vsub.f32 %v766, 1.0
    %v794 = vsub.f32 %v768, 1.0
    %v795 = vsub.f32 %v770, 1.0
    %v796 = vsub.f32 %v772, 1.0
    %v797 = vsub.f32 %v774, 1.0
    %v798 = vsub.f32 %v776, 1.0
    %v799 = vsub.f32 %v778, 1.0
    %v800 = vsub.f32 %v780, 1.0
    %v801 = vsub.f32 %v782, 1.0
    %v802 = vsub.f32 %v784, 1.0
    %v803 = vsub.f32 %v786, 1.0
    %v804 = vsub.f32 %v788, 1.0
    %v805 = vsel %vm741, %v725, %v789
    %v806 = vsel %vm742, %v726, %v790
    %v807 = vsel %vm743, %v727, %v791
    %v808 = vsel %vm744, %v728, %v792
    %v809 = vsel %vm745, %v729, %v793
    %v810 = vsel %vm746, %v730, %v794
    %v811 = vsel %vm747, %v731, %v795
    %v812 = vsel %vm748, %v732, %v796
    %v813 = vsel %vm749, %v733, %v797
    %v814 = vsel %vm750, %v734, %v798
    %v815 = vsel %vm751, %v735, %v799
    %v816 = vsel %vm752, %v736, %v800
    %v817 = vsel %vm753, %v737, %v801
    %v818 = vsel %vm754, %v738, %v802
    %v819 = vsel %vm755, %v739, %v803
    %v820 = vsel %vm756, %v740, %v804
    %v821 = vld [vmem:[#allocation2 + $0x20] sm:$0xff]
    %v822 = vld [vmem:[#allocation2 + $0x28] sm:$0xf]
    %v823 = vld [vmem:[#allocation2 + $0x30] sm:$0x1]
    %v824 = vlaneseq
    %v825 = vshrl.u32 %v824, 7
    %v826 = vsub.s32 0, %v825
    %v827 = vrot.slane %v823, %v826
    %vm828 = vcmask 97280
    %v830 = vsel %vm828, %v805, 0
    %v833 = vsel %vm828, %v806, 0
    %v836 = vsel %vm828, %v807, 0
    %v839 = vsel %vm828, %v808, 0
    %v842 = vsel %vm828, %v809, 0
    %v845 = vsel %vm828, %v810, 0
    %v848 = vsel %vm828, %v811, 0
    %v851 = vsel %vm828, %v812, 0
    %v854 = vsel %vm828, %v813, 0
    %v857 = vsel %vm828, %v814, 0
    %v860 = vsel %vm828, %v815, 0
    %v863 = vsel %vm828, %v816, 0
    %v866 = vsel %vm828, %v817, 0
    %v869 = vsel %vm828, %v818, 0
    %v872 = vsel %vm828, %v819, 0
    %v875 = vsel %vm828, %v820, 0
    %v878 = vsel %vm76, %v822, 0
    %880 = vmatprep.subr.mxu0 0.0
    %881 = vmatpush1.msra.mxu0 %v821
    %882 = vmatprep.subr.mxu0 0.0
    %883 = vmatpush1.msra.mxu0 %v878
    %884 = vmatprep.subr.mxu0 0.0
    %885 = vmatpush1.msra.mxu0 0.0
    %886 = vmatprep.subr.mxu0 0.0
    %887 = vmatpush1.msra.mxu0 0.0
    %888 = vmatprep.subr.mxu0 0.0
    %889 = vmatpush1.msra.mxu0 0.0
    %890 = vmatprep.subr.mxu0 0.0
    %891 = vmatpush1.msra.mxu0 0.0
    %892 = vmatprep.subr.mxu0 0.0
    %893 = vmatpush1.msra.mxu0 0.0
    %894 = vmatprep.subr.mxu0 0.0
    %895 = vmatpush1.msra.mxu0 0.0
    %896 = vmatprep.subr.mxu0 0.0
    %897 = vmatpush1.msra.mxu0 0.0
    %898 = vmatprep.subr.mxu0 0.0
    %899 = vmatpush1.msra.mxu0 0.0
    %900 = vmatprep.subr.mxu0 0.0
    %901 = vmatpush1.msra.mxu0 0.0
    %902 = vmatprep.subr.mxu0 0.0
    %903 = vmatpush1.msra.mxu0 0.0
    %904 = vmatprep.subr.mxu0 0.0
    %905 = vmatpush1.msra.mxu0 0.0
    %906 = vmatprep.subr.mxu0 0.0
    %907 = vmatpush1.msra.mxu0 0.0
    %908 = vmatprep.subr.mxu0 0.0
    %909 = vmatpush1.msra.mxu0 0.0
    %910 = vmatprep.subr.mxu0 0.0
    %911 = vmatpush1.msra.mxu0 0.0
    %912 = vmatprep.subr.mxu0 0.0
    %913 = vmatpush1.msra.mxu0 0.0
    %914 = vmatprep.subr.mxu0 0.0
    %915 = vmatpush1.msra.mxu0 0.0
    %916 = vmatprep.subr.mxu0 0.0
    %917 = vmatpush1.msra.mxu0 0.0
    %918 = vmatprep.subr.mxu0 0.0
    %919 = vmatpush1.msra.mxu0 0.0
    %920 = vmatprep.subr.mxu0 0.0
    %921 = vmatpush1.msra.mxu0 0.0
    %922 = vmatprep.subr.mxu0 0.0
    %923 = vmatpush1.msra.mxu0 0.0
    %924 = vmatprep.subr.mxu0 0.0
    %925 = vmatpush1.msra.mxu0 0.0
    %926 = vmatprep.subr.mxu0 0.0
    %927 = vmatpush1.msra.mxu0 0.0
    %928 = vmatprep.subr.mxu0 0.0
    %929 = vmatpush1.msra.mxu0 0.0
    %930 = vmatprep.subr.mxu0 0.0
    %931 = vmatpush1.msra.mxu0 0.0
    %932 = vmatprep.subr.mxu0 0.0
    %933 = vmatpush1.msra.mxu0 0.0
    %934 = vmatprep.subr.mxu0 0.0
    %935 = vmatpush1.msra.mxu0 0.0
    %936 = vmatprep.subr.mxu0 0.0
    %937 = vmatpush1.msra.mxu0 0.0
    %938 = vmatprep.subr.mxu0 0.0
    %939 = vmatpush1.msra.mxu0 0.0
    %940 = vmatprep.subr.mxu0 0.0
    %941 = vmatpush1.msra.mxu0 0.0
    %942 = vmatprep.subr.mxu0 0.0
    %943 = vmatpush1.msra.mxu0 0.0
    %944 = vmatprep.mubr.f32.mxu0 0.0
    %945 = vmatmul.mubr.f32.gmra.mrb[0].mxu0 %v830
    %v946 = vpop.f32.mrb[0].mxu0
    %v947 = vadd.f32 %v827, %v946
    %v948 = vpop.f32.mrb[0].mxu0
    %949 = vmatprep.mubr.f32.mxu0 0.0
    %950 = vmatmul.mubr.f32.gmra.mrb[0].mxu0 %v833
    %v951 = vpop.f32.mrb[0].mxu0
    %v952 = vadd.f32 %v827, %v951
    %v953 = vpop.f32.mrb[0].mxu0
    %954 = vmatprep.mubr.f32.mxu0 0.0
    %955 = vmatmul.mubr.f32.gmra.mrb[0].mxu0 %v836
    %v956 = vpop.f32.mrb[0].mxu0
    %v957 = vadd.f32 %v827, %v956
    %v958 = vpop.f32.mrb[0].mxu0
    %959 = vmatprep.mubr.f32.mxu0 0.0
    %960 = vmatmul.mubr.f32.gmra.mrb[0].mxu0 %v839
    %v961 = vpop.f32.mrb[0].mxu0
    %v962 = vadd.f32 %v827, %v961
    %v963 = vpop.f32.mrb[0].mxu0
    %964 = vmatprep.mubr.f32.mxu0 0.0
    %965 = vmatmul.mubr.f32.gmra.mrb[0].mxu0 %v842
    %v966 = vpop.f32.mrb[0].mxu0
    %v967 = vadd.f32 %v827, %v966
    %v968 = vpop.f32.mrb[0].mxu0
    %969 = vmatprep.mubr.f32.mxu0 0.0
    %970 = vmatmul.mubr.f32.gmra.mrb[0].mxu0 %v845
    %v971 = vpop.f32.mrb[0].mxu0
    %v972 = vadd.f32 %v827, %v971
    %v973 = vpop.f32.mrb[0].mxu0
    %974 = vmatprep.mubr.f32.mxu0 0.0
    %975 = vmatmul.mubr.f32.gmra.mrb[0].mxu0 %v848
    %v976 = vpop.f32.mrb[0].mxu0
    %v977 = vadd.f32 %v827, %v976
    %v978 = vpop.f32.mrb[0].mxu0
    %979 = vmatprep.mubr.f32.mxu0 0.0
    %980 = vmatmul.mubr.f32.gmra.mrb[0].mxu0 %v851
    %v981 = vpop.f32.mrb[0].mxu0
    %v982 = vadd.f32 %v827, %v981
    %v983 = vpop.f32.mrb[0].mxu0
    %984 = vmatprep.mubr.f32.mxu0 0.0
    %985 = vmatmul.mubr.f32.gmra.mrb[0].mxu0 %v854
    %v986 = vpop.f32.mrb[0].mxu0
    %v987 = vadd.f32 %v827, %v986
    %v988 = vpop.f32.mrb[0].mxu0
    %989 = vmatprep.mubr.f32.mxu0 0.0
    %990 = vmatmul.mubr.f32.gmra.mrb[0].mxu0 %v857
    %v991 = vpop.f32.mrb[0].mxu0
    %v992 = vadd.f32 %v827, %v991
    %v993 = vpop.f32.mrb[0].mxu0
    %994 = vmatprep.mubr.f32.mxu0 0.0
    %995 = vmatmul.mubr.f32.gmra.mrb[0].mxu0 %v860
    %v996 = vpop.f32.mrb[0].mxu0
    %v997 = vadd.f32 %v827, %v996
    %v998 = vpop.f32.mrb[0].mxu0
    %999 = vmatprep.mubr.f32.mxu0 0.0
    %1000 = vmatmul.mubr.f32.gmra.mrb[0].mxu0 %v863
    %v1001 = vpop.f32.mrb[0].mxu0
    %v1002 = vadd.f32 %v827, %v1001
    %v1003 = vpop.f32.mrb[0].mxu0
    %1004 = vmatprep.mubr.f32.mxu0 0.0
    %1005 = vmatmul.mubr.f32.gmra.mrb[0].mxu0 %v866
    %v1006 = vpop.f32.mrb[0].mxu0
    %v1007 = vadd.f32 %v827, %v1006
    %v1008 = vpop.f32.mrb[0].mxu0
    %1009 = vmatprep.mubr.f32.mxu0 0.0
    %1010 = vmatmul.mubr.f32.gmra.mrb[0].mxu0 %v869
    %v1011 = vpop.f32.mrb[0].mxu0
    %v1012 = vadd.f32 %v827, %v1011
    %v1013 = vpop.f32.mrb[0].mxu0
    %1014 = vmatprep.mubr.f32.mxu0 0.0
    %1015 = vmatmul.mubr.f32.gmra.mrb[0].mxu0 %v872
    %v1016 = vpop.f32.mrb[0].mxu0
    %v1017 = vadd.f32 %v827, %v1016
    %v1018 = vpop.f32.mrb[0].mxu0
    %1019 = vmatprep.mubr.f32.mxu0 0.0
    %1020 = vmatmul.mubr.f32.gmra.mrb[0].mxu0 %v875
    %v1021 = vpop.f32.mrb[0].mxu0
    %v1022 = vadd.f32 %v827, %v1021
    %v1023 = vpop.f32.mrb[0].mxu0
    %1024 = vdwg.mxu0
    %vm1025 = vcmp.gt.f32.partialorder %v947, 0.0
    %vm1026 = vcmp.gt.f32.partialorder %v952, 0.0
    %vm1027 = vcmp.gt.f32.partialorder %v957, 0.0
    %vm1028 = vcmp.gt.f32.partialorder %v962, 0.0
    %vm1029 = vcmp.gt.f32.partialorder %v967, 0.0
    %vm1030 = vcmp.gt.f32.partialorder %v972, 0.0
    %vm1031 = vcmp.gt.f32.partialorder %v977, 0.0
    %vm1032 = vcmp.gt.f32.partialorder %v982, 0.0
    %vm1033 = vcmp.gt.f32.partialorder %v987, 0.0
    %vm1034 = vcmp.gt.f32.partialorder %v992, 0.0
    %vm1035 = vcmp.gt.f32.partialorder %v997, 0.0
    %vm1036 = vcmp.gt.f32.partialorder %v1002, 0.0
    %vm1037 = vcmp.gt.f32.partialorder %v1007, 0.0
    %vm1038 = vcmp.gt.f32.partialorder %v1012, 0.0
    %vm1039 = vcmp.gt.f32.partialorder %v1017, 0.0
    %vm1040 = vcmp.gt.f32.partialorder %v1022, 0.0
    %v1041 = vmul.f32 %v947, 1.442695
    %v1042 = vpow.pop %v1041
    %v1043 = vmul.f32 %v952, 1.442695
    %v1044 = vpow.pop %v1043
    %v1045 = vmul.f32 %v957, 1.442695
    %v1046 = vpow.pop %v1045
    %v1047 = vmul.f32 %v962, 1.442695
    %v1048 = vpow.pop %v1047
    %v1049 = vmul.f32 %v967, 1.442695
    %v1050 = vpow.pop %v1049
    %v1051 = vmul.f32 %v972, 1.442695
    %v1052 = vpow.pop %v1051
    %v1053 = vmul.f32 %v977, 1.442695
    %v1054 = vpow.pop %v1053
    %v1055 = vmul.f32 %v982, 1.442695
    %v1056 = vpow.pop %v1055
    %v1057 = vmul.f32 %v987, 1.442695
    %v1058 = vpow.pop %v1057
    %v1059 = vmul.f32 %v992, 1.442695
    %v1060 = vpow.pop %v1059
    %v1061 = vmul.f32 %v997, 1.442695
    %v1062 = vpow.pop %v1061
    %v1063 = vmul.f32 %v1002, 1.442695
    %v1064 = vpow.pop %v1063
    %v1065 = vmul.f32 %v1007, 1.442695
    %v1066 = vpow.pop %v1065
    %v1067 = vmul.f32 %v1012, 1.442695
    %v1068 = vpow.pop %v1067
    %v1069 = vmul.f32 %v1017, 1.442695
    %v1070 = vpow.pop %v1069
    %v1071 = vmul.f32 %v1022, 1.442695
    %v1072 = vpow.pop %v1071
    %v1073 = vsub.f32 %v1042, 1.0
    %v1074 = vsub.f32 %v1044, 1.0
    %v1075 = vsub.f32 %v1046, 1.0
    %v1076 = vsub.f32 %v1048, 1.0
    %v1077 = vsub.f32 %v1050, 1.0
    %v1078 = vsub.f32 %v1052, 1.0
    %v1079 = vsub.f32 %v1054, 1.0
    %v1080 = vsub.f32 %v1056, 1.0
    %v1081 = vsub.f32 %v1058, 1.0
    %v1082 = vsub.f32 %v1060, 1.0
    %v1083 = vsub.f32 %v1062, 1.0
    %v1084 = vsub.f32 %v1064, 1.0
    %v1085 = vsub.f32 %v1066, 1.0
    %v1086 = vsub.f32 %v1068, 1.0
    %v1087 = vsub.f32 %v1070, 1.0
    %v1088 = vsub.f32 %v1072, 1.0
    %v1089 = vsel %vm1025, %v947, %v1073
    %v1090 = vsel %vm1026, %v952, %v1074
    %v1091 = vsel %vm1027, %v957, %v1075
    %v1092 = vsel %vm1028, %v962, %v1076
    %v1093 = vsel %vm1029, %v967, %v1077
    %v1094 = vsel %vm1030, %v972, %v1078
    %v1095 = vsel %vm1031, %v977, %v1079
    %v1096 = vsel %vm1032, %v982, %v1080
    %v1097 = vsel %vm1033, %v987, %v1081
    %v1098 = vsel %vm1034, %v992, %v1082
    %v1099 = vsel %vm1035, %v997, %v1083
    %v1100 = vsel %vm1036, %v1002, %v1084
    %v1101 = vsel %vm1037, %v1007, %v1085
    %v1102 = vsel %vm1038, %v1012, %v1086
    %v1103 = vsel %vm1039, %v1017, %v1087
    %v1104 = vsel %vm1040, %v1022, %v1088
    %v1105 = vld [vmem:[#allocation2 + $0x38] sm:$0xff]
    %v1106 = vld [vmem:[#allocation2 + $0x40] sm:$0xf]
    %v1107 = vld [vmem:[#allocation2 + $0x48] sm:$0x1]
    %v1108 = vlaneseq
    %v1109 = vshrl.u32 %v1108, 7
    %v1110 = vsub.s32 0, %v1109
    %v1111 = vrot.slane %v1107, %v1110
    %v1113 = vsel %vm828, %v1089, 0
    %v1116 = vsel %vm828, %v1090, 0
    %v1119 = vsel %vm828, %v1091, 0
    %v1122 = vsel %vm828, %v1092, 0
    %v1125 = vsel %vm828, %v1093, 0
    %v1128 = vsel %vm828, %v1094, 0
    %v1131 = vsel %vm828, %v1095, 0
    %v1134 = vsel %vm828, %v1096, 0
    %v1137 = vsel %vm828, %v1097, 0
    %v1140 = vsel %vm828, %v1098, 0
    %v1143 = vsel %vm828, %v1099, 0
    %v1146 = vsel %vm828, %v1100, 0
    %v1149 = vsel %vm828, %v1101, 0
    %v1152 = vsel %vm828, %v1102, 0
    %v1155 = vsel %vm828, %v1103, 0
    %v1158 = vsel %vm828, %v1104, 0
    %v1161 = vsel %vm76, %v1106, 0
    %1163 = vmatprep.subr.mxu0 0.0
    %1164 = vmatpush1.msra.mxu0 %v1105
    %1165 = vmatprep.subr.mxu0 0.0
    %1166 = vmatpush1.msra.mxu0 %v1161
    %1167 = vmatprep.subr.mxu0 0.0
    %1168 = vmatpush1.msra.mxu0 0.0
    %1169 = vmatprep.subr.mxu0 0.0
    %1170 = vmatpush1.msra.mxu0 0.0
    %1171 = vmatprep.subr.mxu0 0.0
    %1172 = vmatpush1.msra.mxu0 0.0
    %1173 = vmatprep.subr.mxu0 0.0
    %1174 = vmatpush1.msra.mxu0 0.0
    %1175 = vmatprep.subr.mxu0 0.0
    %1176 = vmatpush1.msra.mxu0 0.0
    %1177 = vmatprep.subr.mxu0 0.0
    %1178 = vmatpush1.msra.mxu0 0.0
    %1179 = vmatprep.subr.mxu0 0.0
    %1180 = vmatpush1.msra.mxu0 0.0
    %1181 = vmatprep.subr.mxu0 0.0
    %1182 = vmatpush1.msra.mxu0 0.0
    %1183 = vmatprep.subr.mxu0 0.0
    %1184 = vmatpush1.msra.mxu0 0.0
    %1185 = vmatprep.subr.mxu0 0.0
    %1186 = vmatpush1.msra.mxu0 0.0
    %1187 = vmatprep.subr.mxu0 0.0
    %1188 = vmatpush1.msra.mxu0 0.0
    %1189 = vmatprep.subr.mxu0 0.0
    %1190 = vmatpush1.msra.mxu0 0.0
    %1191 = vmatprep.subr.mxu0 0.0
    %1192 = vmatpush1.msra.mxu0 0.0
    %1193 = vmatprep.subr.mxu0 0.0
    %1194 = vmatpush1.msra.mxu0 0.0
    %1195 = vmatprep.subr.mxu0 0.0
    %1196 = vmatpush1.msra.mxu0 0.0
    %1197 = vmatprep.subr.mxu0 0.0
    %1198 = vmatpush1.msra.mxu0 0.0
    %1199 = vmatprep.subr.mxu0 0.0
    %1200 = vmatpush1.msra.mxu0 0.0
    %1201 = vmatprep.subr.mxu0 0.0
    %1202 = vmatpush1.msra.mxu0 0.0
    %1203 = vmatprep.subr.mxu0 0.0
    %1204 = vmatpush1.msra.mxu0 0.0
    %1205 = vmatprep.subr.mxu0 0.0
    %1206 = vmatpush1.msra.mxu0 0.0
    %1207 = vmatprep.subr.mxu0 0.0
    %1208 = vmatpush1.msra.mxu0 0.0
    %1209 = vmatprep.subr.mxu0 0.0
    %1210 = vmatpush1.msra.mxu0 0.0
    %1211 = vmatprep.subr.mxu0 0.0
    %1212 = vmatpush1.msra.mxu0 0.0
    %1213 = vmatprep.subr.mxu0 0.0
    %1214 = vmatpush1.msra.mxu0 0.0
    %1215 = vmatprep.subr.mxu0 0.0
    %1216 = vmatpush1.msra.mxu0 0.0
    %1217 = vmatprep.subr.mxu0 0.0
    %1218 = vmatpush1.msra.mxu0 0.0
    %1219 = vmatprep.subr.mxu0 0.0
    %1220 = vmatpush1.msra.mxu0 0.0
    %1221 = vmatprep.subr.mxu0 0.0
    %1222 = vmatpush1.msra.mxu0 0.0
    %1223 = vmatprep.subr.mxu0 0.0
    %1224 = vmatpush1.msra.mxu0 0.0
    %1225 = vmatprep.subr.mxu0 0.0
    %1226 = vmatpush1.msra.mxu0 0.0
    %1227 = vmatprep.mubr.f32.mxu0 0.0
    %1228 = vmatmul.mubr.f32.gmra.mrb[0].mxu0 %v1113
    %v1229 = vpop.f32.mrb[0].mxu0
    %v1230 = vadd.f32 %v1111, %v1229
    %v1231 = vpop.f32.mrb[0].mxu0
    %1232 = vmatprep.mubr.f32.mxu0 0.0
    %1233 = vmatmul.mubr.f32.gmra.mrb[0].mxu0 %v1116
    %v1234 = vpop.f32.mrb[0].mxu0
    %v1235 = vadd.f32 %v1111, %v1234
    %v1236 = vpop.f32.mrb[0].mxu0
    %1237 = vmatprep.mubr.f32.mxu0 0.0
    %1238 = vmatmul.mubr.f32.gmra.mrb[0].mxu0 %v1119
    %v1239 = vpop.f32.mrb[0].mxu0
    %v1240 = vadd.f32 %v1111, %v1239
    %v1241 = vpop.f32.mrb[0].mxu0
    %1242 = vmatprep.mubr.f32.mxu0 0.0
    %1243 = vmatmul.mubr.f32.gmra.mrb[0].mxu0 %v1122
    %v1244 = vpop.f32.mrb[0].mxu0
    %v1245 = vadd.f32 %v1111, %v1244
    %v1246 = vpop.f32.mrb[0].mxu0
    %1247 = vmatprep.mubr.f32.mxu0 0.0
    %1248 = vmatmul.mubr.f32.gmra.mrb[0].mxu0 %v1125
    %v1249 = vpop.f32.mrb[0].mxu0
    %v1250 = vadd.f32 %v1111, %v1249
    %v1251 = vpop.f32.mrb[0].mxu0
    %1252 = vmatprep.mubr.f32.mxu0 0.0
    %1253 = vmatmul.mubr.f32.gmra.mrb[0].mxu0 %v1128
    %v1254 = vpop.f32.mrb[0].mxu0
    %v1255 = vadd.f32 %v1111, %v1254
    %v1256 = vpop.f32.mrb[0].mxu0
    %1257 = vmatprep.mubr.f32.mxu0 0.0
    %1258 = vmatmul.mubr.f32.gmra.mrb[0].mxu0 %v1131
    %v1259 = vpop.f32.mrb[0].mxu0
    %v1260 = vadd.f32 %v1111, %v1259
    %v1261 = vpop.f32.mrb[0].mxu0
    %1262 = vmatprep.mubr.f32.mxu0 0.0
    %1263 = vmatmul.mubr.f32.gmra.mrb[0].mxu0 %v1134
    %v1264 = vpop.f32.mrb[0].mxu0
    %v1265 = vadd.f32 %v1111, %v1264
    %v1266 = vpop.f32.mrb[0].mxu0
    %1267 = vmatprep.mubr.f32.mxu0 0.0
    %1268 = vmatmul.mubr.f32.gmra.mrb[0].mxu0 %v1137
    %v1269 = vpop.f32.mrb[0].mxu0
    %v1270 = vadd.f32 %v1111, %v1269
    %v1271 = vpop.f32.mrb[0].mxu0
    %1272 = vmatprep.mubr.f32.mxu0 0.0
    %1273 = vmatmul.mubr.f32.gmra.mrb[0].mxu0 %v1140
    %v1274 = vpop.f32.mrb[0].mxu0
    %v1275 = vadd.f32 %v1111, %v1274
    %v1276 = vpop.f32.mrb[0].mxu0
    %1277 = vmatprep.mubr.f32.mxu0 0.0
    %1278 = vmatmul.mubr.f32.gmra.mrb[0].mxu0 %v1143
    %v1279 = vpop.f32.mrb[0].mxu0
    %v1280 = vadd.f32 %v1111, %v1279
    %v1281 = vpop.f32.mrb[0].mxu0
    %1282 = vmatprep.mubr.f32.mxu0 0.0
    %1283 = vmatmul.mubr.f32.gmra.mrb[0].mxu0 %v1146
    %v1284 = vpop.f32.mrb[0].mxu0
    %v1285 = vadd.f32 %v1111, %v1284
    %v1286 = vpop.f32.mrb[0].mxu0
    %1287 = vmatprep.mubr.f32.mxu0 0.0
    %1288 = vmatmul.mubr.f32.gmra.mrb[0].mxu0 %v1149
    %v1289 = vpop.f32.mrb[0].mxu0
    %v1290 = vadd.f32 %v1111, %v1289
    %v1291 = vpop.f32.mrb[0].mxu0
    %1292 = vmatprep.mubr.f32.mxu0 0.0
    %1293 = vmatmul.mubr.f32.gmra.mrb[0].mxu0 %v1152
    %v1294 = vpop.f32.mrb[0].mxu0
    %v1295 = vadd.f32 %v1111, %v1294
    %v1296 = vpop.f32.mrb[0].mxu0
    %1297 = vmatprep.mubr.f32.mxu0 0.0
    %1298 = vmatmul.mubr.f32.gmra.mrb[0].mxu0 %v1155
    %v1299 = vpop.f32.mrb[0].mxu0
    %v1300 = vadd.f32 %v1111, %v1299
    %v1301 = vpop.f32.mrb[0].mxu0
    %1302 = vmatprep.mubr.f32.mxu0 0.0
    %1303 = vmatmul.mubr.f32.gmra.mrb[0].mxu0 %v1158
    %v1304 = vpop.f32.mrb[0].mxu0
    %v1305 = vadd.f32 %v1111, %v1304
    %v1306 = vpop.f32.mrb[0].mxu0
    %1307 = vdwg.mxu0
    %1309 = vset.pattern.permute.xlu0 0
    %1310 = vperm.xlu0 %1309, %v52
    %v1311 = vpop.permute.xlu0 %1310
    %1314 = vset.pattern.permute.xlu0 0
    %1315 = vperm.xlu0 %1314, %v53
    %v1316 = vpop.permute.xlu0 %1315
    %1319 = vset.pattern.permute.xlu0 0
    %1320 = vperm.xlu0 %1319, %v54
    %v1321 = vpop.permute.xlu0 %1320
    %1324 = vset.pattern.permute.xlu0 0
    %1325 = vperm.xlu0 %1324, %v55
    %v1326 = vpop.permute.xlu0 %1325
    %1329 = vset.pattern.permute.xlu0 0
    %1330 = vperm.xlu0 %1329, %v56
    %v1331 = vpop.permute.xlu0 %1330
    %1334 = vset.pattern.permute.xlu0 0
    %1335 = vperm.xlu0 %1334, %v57
    %v1336 = vpop.permute.xlu0 %1335
    %1339 = vset.pattern.permute.xlu0 0
    %1340 = vperm.xlu0 %1339, %v58
    %v1341 = vpop.permute.xlu0 %1340
    %1344 = vset.pattern.permute.xlu0 0
    %1345 = vperm.xlu0 %1344, %v59
    %v1346 = vpop.permute.xlu0 %1345
    %1349 = vset.pattern.permute.xlu0 0
    %1350 = vperm.xlu0 %1349, %v60
    %v1351 = vpop.permute.xlu0 %1350
    %1354 = vset.pattern.permute.xlu0 0
    %1355 = vperm.xlu0 %1354, %v61
    %v1356 = vpop.permute.xlu0 %1355
    %1359 = vset.pattern.permute.xlu0 0
    %1360 = vperm.xlu0 %1359, %v62
    %v1361 = vpop.permute.xlu0 %1360
    %1364 = vset.pattern.permute.xlu0 0
    %1365 = vperm.xlu0 %1364, %v63
    %v1366 = vpop.permute.xlu0 %1365
    %1369 = vset.pattern.permute.xlu0 0
    %1370 = vperm.xlu0 %1369, %v64
    %v1371 = vpop.permute.xlu0 %1370
    %1374 = vset.pattern.permute.xlu0 0
    %1375 = vperm.xlu0 %1374, %v65
    %v1376 = vpop.permute.xlu0 %1375
    %1379 = vset.pattern.permute.xlu0 0
    %1380 = vperm.xlu0 %1379, %v66
    %v1381 = vpop.permute.xlu0 %1380
    %1384 = vset.pattern.permute.xlu0 0
    %1385 = vperm.xlu0 %1384, %v67
    %v1386 = vpop.permute.xlu0 %1385
    %v1388 = vmul.f32 %v1230, %v1311
    %v1389 = vmul.f32 %v1235, %v1316
    %v1390 = vmul.f32 %v1240, %v1321
    %v1391 = vmul.f32 %v1245, %v1326
    %v1392 = vmul.f32 %v1250, %v1331
    %v1393 = vmul.f32 %v1255, %v1336
    %v1394 = vmul.f32 %v1260, %v1341
    %v1395 = vmul.f32 %v1265, %v1346
    %v1396 = vmul.f32 %v1270, %v1351
    %v1397 = vmul.f32 %v1275, %v1356
    %v1398 = vmul.f32 %v1280, %v1361
    %v1399 = vmul.f32 %v1285, %v1366
    %v1400 = vmul.f32 %v1290, %v1371
    %v1401 = vmul.f32 %v1295, %v1376
    %v1402 = vmul.f32 %v1300, %v1381
    %v1403 = vmul.f32 %v1305, %v1386
    %1404 = vst.msk [vmem:[%s5] sm:$0xff] %vm329, %v1388
    %1405 = vst.msk [vmem:[%s5 + $0x8] sm:$0xff] %vm329, %v1389
    %1406 = vst.msk [vmem:[%s5 + $0x10] sm:$0xff] %vm329, %v1390
    %1407 = vst.msk [vmem:[%s5 + $0x18] sm:$0xff] %vm329, %v1391
    %1408 = vst.msk [vmem:[%s5 + $0x20] sm:$0xff] %vm329, %v1392
    %1409 = vst.msk [vmem:[%s5 + $0x28] sm:$0xff] %vm329, %v1393
    %1410 = vst.msk [vmem:[%s5 + $0x30] sm:$0xff] %vm329, %v1394
    %1411 = vst.msk [vmem:[%s5 + $0x38] sm:$0xff] %vm329, %v1395
    %1412 = vst.msk [vmem:[%s5 + $0x40] sm:$0xff] %vm329, %v1396
    %1413 = vst.msk [vmem:[%s5 + $0x48] sm:$0xff] %vm329, %v1397
    %1414 = vst.msk [vmem:[%s5 + $0x50] sm:$0xff] %vm329, %v1398
    %1415 = vst.msk [vmem:[%s5 + $0x58] sm:$0xff] %vm329, %v1399
    %1416 = vst.msk [vmem:[%s5 + $0x60] sm:$0xff] %vm329, %v1400
    %1417 = vst.msk [vmem:[%s5 + $0x68] sm:$0xff] %vm329, %v1401
    %1418 = vst.msk [vmem:[%s5 + $0x70] sm:$0xff] %vm329, %v1402
    %1419 = vst.msk [vmem:[%s5 + $0x78] sm:$0xff] %vm329, %v1403
    %v1420 = vld [vmem:[#allocation2 + $0xd0] sm:$0xff]
    %v1421 = vld [vmem:[#allocation2 + $0xd8] sm:$0xff]
    %1422 = vmatprep.subr.mxu0 0.0
    %1423 = vmatpush1.msra.mxu0 %v1388
    %1424 = vmatprep.subr.mxu0 0.0
    %1425 = vmatpush1.msra.mxu0 %v1389
    %1426 = vmatprep.subr.mxu0 0.0
    %1427 = vmatpush1.msra.mxu0 %v1390
    %1428 = vmatprep.subr.mxu0 0.0
    %1429 = vmatpush1.msra.mxu0 %v1391
    %1430 = vmatprep.subr.mxu0 0.0
    %1431 = vmatpush1.msra.mxu0 %v1392
    %1432 = vmatprep.subr.mxu0 0.0
    %1433 = vmatpush1.msra.mxu0 %v1393
    %1434 = vmatprep.subr.mxu0 0.0
    %1435 = vmatpush1.msra.mxu0 %v1394
    %1436 = vmatprep.subr.mxu0 0.0
    %1437 = vmatpush1.msra.mxu0 %v1395
    %1438 = vmatprep.subr.mxu0 0.0
    %1439 = vmatpush1.msra.mxu0 %v1396
    %1440 = vmatprep.subr.mxu0 0.0
    %1441 = vmatpush1.msra.mxu0 %v1397
    %1442 = vmatprep.subr.mxu0 0.0
    %1443 = vmatpush1.msra.mxu0 %v1398
    %1444 = vmatprep.subr.mxu0 0.0
    %1445 = vmatpush1.msra.mxu0 %v1399
    %1446 = vmatprep.subr.mxu0 0.0
    %1447 = vmatpush1.msra.mxu0 %v1400
    %1448 = vmatprep.subr.mxu0 0.0
    %1449 = vmatpush1.msra.mxu0 %v1401
    %1450 = vmatprep.subr.mxu0 0.0
    %1451 = vmatpush1.msra.mxu0 %v1402
    %1452 = vmatprep.subr.mxu0 0.0
    %1453 = vmatpush1.msra.mxu0 %v1403
    %1454 = vmatprep.subr.mxu0 0.0
    %1455 = vmatpush1.msra.mxu0 0.0
    %1456 = vmatprep.subr.mxu0 0.0
    %1457 = vmatpush1.msra.mxu0 0.0
    %1458 = vmatprep.subr.mxu0 0.0
    %1459 = vmatpush1.msra.mxu0 0.0
    %1460 = vmatprep.subr.mxu0 0.0
    %1461 = vmatpush1.msra.mxu0 0.0
    %1462 = vmatprep.subr.mxu0 0.0
    %1463 = vmatpush1.msra.mxu0 0.0
    %1464 = vmatprep.subr.mxu0 0.0
    %1465 = vmatpush1.msra.mxu0 0.0
    %1466 = vmatprep.subr.mxu0 0.0
    %1467 = vmatpush1.msra.mxu0 0.0
    %1468 = vmatprep.subr.mxu0 0.0
    %1469 = vmatpush1.msra.mxu0 0.0
    %1470 = vmatprep.subr.mxu0 0.0
    %1471 = vmatpush1.msra.mxu0 0.0
    %1472 = vmatprep.subr.mxu0 0.0
    %1473 = vmatpush1.msra.mxu0 0.0
    %1474 = vmatprep.subr.mxu0 0.0
    %1475 = vmatpush1.msra.mxu0 0.0
    %1476 = vmatprep.subr.mxu0 0.0
    %1477 = vmatpush1.msra.mxu0 0.0
    %1478 = vmatprep.subr.mxu0 0.0
    %1479 = vmatpush1.msra.mxu0 0.0
    %1480 = vmatprep.subr.mxu0 0.0
    %1481 = vmatpush1.msra.mxu0 0.0
    %1482 = vmatprep.subr.mxu0 0.0
    %1483 = vmatpush1.msra.mxu0 0.0
    %1484 = vmatprep.subr.mxu0 0.0
    %1485 = vmatpush1.msra.mxu0 0.0
    %1486 = vmatprep.mubr.f32.mxu0 0.0
    %1487 = vmatmul.mubr.f32.gmra.mrb[0].mxu0 %v1420
    %v1488 = vpop.f32.mrb[0].mxu0
    %v1489 = vadd.f32 0.0, %v1488
    %v1490 = vpop.f32.mrb[0].mxu0
    %1491 = vmatprep.mubr.f32.mxu0 0.0
    %1492 = vmatmul.mubr.f32.gmra.mrb[0].mxu0 %v1421
    %v1493 = vpop.f32.mrb[0].mxu0
    %v1494 = vadd.f32 0.0, %v1493
    %v1495 = vpop.f32.mrb[0].mxu0
    %1496 = vdwg.mxu0
    %v1497 = vld [vmem:[#allocation2 + $0xe0] sm:$0xff]
    %v1498 = vld [vmem:[#allocation2 + $0xe8] sm:$0xff]
    %v1499 = vld [vmem:[#allocation2 + $0xf0] sm:$0xff]
    %v1500 = vld [vmem:[#allocation2 + $0xf8] sm:$0xff]
    %v1502 = vsel %vm329, %v1489, 0
    %v1505 = vsel %vm329, %v1494, 0
    %1507 = vmatprep.subr.mxu0 0.0
    %1508 = vmatpush1.msra.mxu0 %v1497
    %1509 = vmatprep.subr.mxu0 0.0
    %1510 = vmatpush1.msra.mxu0 %v1498
    %1511 = vmatprep.subr.mxu0 0.0
    %1512 = vmatpush1.msra.mxu0 %v1499
    %1513 = vmatprep.subr.mxu0 0.0
    %1514 = vmatpush1.msra.mxu0 %v1500
    %1515 = vmatprep.subr.mxu0 0.0
    %1516 = vmatpush1.msra.mxu0 0.0
    %1517 = vmatprep.subr.mxu0 0.0
    %1518 = vmatpush1.msra.mxu0 0.0
    %1519 = vmatprep.subr.mxu0 0.0
    %1520 = vmatpush1.msra.mxu0 0.0
    %1521 = vmatprep.subr.mxu0 0.0
    %1522 = vmatpush1.msra.mxu0 0.0
    %1523 = vmatprep.subr.mxu0 0.0
    %1524 = vmatpush1.msra.mxu0 0.0
    %1525 = vmatprep.subr.mxu0 0.0
    %1526 = vmatpush1.msra.mxu0 0.0
    %1527 = vmatprep.subr.mxu0 0.0
    %1528 = vmatpush1.msra.mxu0 0.0
    %1529 = vmatprep.subr.mxu0 0.0
    %1530 = vmatpush1.msra.mxu0 0.0
    %1531 = vmatprep.subr.mxu0 0.0
    %1532 = vmatpush1.msra.mxu0 0.0
    %1533 = vmatprep.subr.mxu0 0.0
    %1534 = vmatpush1.msra.mxu0 0.0
    %1535 = vmatprep.subr.mxu0 0.0
    %1536 = vmatpush1.msra.mxu0 0.0
    %1537 = vmatprep.subr.mxu0 0.0
    %1538 = vmatpush1.msra.mxu0 0.0
    %1539 = vmatprep.subr.mxu0 0.0
    %1540 = vmatpush1.msra.mxu0 0.0
    %1541 = vmatprep.subr.mxu0 0.0
    %1542 = vmatpush1.msra.mxu0 0.0
    %1543 = vmatprep.subr.mxu0 0.0
    %1544 = vmatpush1.msra.mxu0 0.0
    %1545 = vmatprep.subr.mxu0 0.0
    %1546 = vmatpush1.msra.mxu0 0.0
    %1547 = vmatprep.subr.mxu0 0.0
    %1548 = vmatpush1.msra.mxu0 0.0
    %1549 = vmatprep.subr.mxu0 0.0
    %1550 = vmatpush1.msra.mxu0 0.0
    %1551 = vmatprep.subr.mxu0 0.0
    %1552 = vmatpush1.msra.mxu0 0.0
    %1553 = vmatprep.subr.mxu0 0.0
    %1554 = vmatpush1.msra.mxu0 0.0
    %1555 = vmatprep.subr.mxu0 0.0
    %1556 = vmatpush1.msra.mxu0 0.0
    %1557 = vmatprep.subr.mxu0 0.0
    %1558 = vmatpush1.msra.mxu0 0.0
    %1559 = vmatprep.subr.mxu0 0.0
    %1560 = vmatpush1.msra.mxu0 0.0
    %1561 = vmatprep.subr.mxu0 0.0
    %1562 = vmatpush1.msra.mxu0 0.0
    %1563 = vmatprep.subr.mxu0 0.0
    %1564 = vmatpush1.msra.mxu0 0.0
    %1565 = vmatprep.subr.mxu0 0.0
    %1566 = vmatpush1.msra.mxu0 0.0
    %1567 = vmatprep.subr.mxu0 0.0
    %1568 = vmatpush1.msra.mxu0 0.0
    %1569 = vmatprep.subr.mxu0 0.0
    %1570 = vmatpush1.msra.mxu0 0.0
    %1571 = vmatprep.mubr.f32.mxu0 0.0
    %1572 = vmatmul.mubr.f32.gmra.mrb[0].mxu0 %v1502
    %v1573 = vpop.f32.mrb[0].mxu0
    %v1574 = vadd.f32 %v305, %v1573
    %v1575 = vpop.f32.mrb[0].mxu0
    %1576 = vmatprep.mubr.f32.mxu0 0.0
    %1577 = vmatmul.mubr.f32.gmra.mrb[0].mxu0 %v1505
    %v1578 = vpop.f32.mrb[0].mxu0
    %v1579 = vadd.f32 %v310, %v1578
    %v1580 = vpop.f32.mrb[0].mxu0
    %1581 = vdwg.mxu0
    %v1582 = vld [vmem:[#allocation2 + $0x108] sm:$0x1]
    %v1583 = vlaneseq
    %v1584 = vshrl.u32 %v1583, 7
    %v1585 = vsub.s32 0, %v1584
    %v1586 = vrot.slane %v1582, %v1585
    %v1587 = vadd.f32 %v1574, %v1586
    %v1588 = vadd.f32 %v1579, %v1586
    %vm1589 = vcmp.gt.f32.partialorder %v1587, 0.0
    %vm1590 = vcmp.gt.f32.partialorder %v1588, 0.0
    %v1591 = vmul.f32 %v1587, 1.442695
    %v1592 = vpow.pop %v1591
    %v1593 = vmul.f32 %v1588, 1.442695
    %v1594 = vpow.pop %v1593
    %v1595 = vsub.f32 %v1592, 1.0
    %v1596 = vsub.f32 %v1594, 1.0
    %v1597 = vsel %vm1589, %v1587, %v1595
    %v1598 = vsel %vm1590, %v1588, %v1596
    %v1599 = vld [vmem:[#allocation2 + $0x110] sm:$0xff]
    %v1600 = vld [vmem:[#allocation2 + $0x118] sm:$0xff]
    %v1601 = vld [vmem:[#allocation2 + $0x120] sm:$0xff]
    %v1602 = vld [vmem:[#allocation2 + $0x128] sm:$0xff]
    %v1603 = vld [vmem:[#allocation2 + $0x130] sm:$0xff]
    %v1604 = vld [vmem:[#allocation2 + $0x138] sm:$0xff]
    %v1605 = vld [vmem:[#allocation2 + $0x140] sm:$0xff]
    %v1606 = vld [vmem:[#allocation2 + $0x148] sm:$0xff]
    %v1607 = vld [vmem:[#allocation2 + $0x150] sm:$0x1]
    %v1608 = vlaneseq
    %v1609 = vshrl.u32 %v1608, 7
    %v1610 = vsub.s32 0, %v1609
    %v1611 = vrot.slane %v1607, %v1610
    %vm1612 = vcmask 523264
    %v1614 = vsel %vm1612, %v1597, 0
    %v1617 = vsel %vm1612, %v1598, 0
    %1619 = vmatprep.subr.mxu0 0.0
    %1620 = vmatpush1.msra.mxu0 %v1599
    %1621 = vmatprep.subr.mxu0 0.0
    %1622 = vmatpush1.msra.mxu0 %v1600
    %1623 = vmatprep.subr.mxu0 0.0
    %1624 = vmatpush1.msra.mxu0 %v1601
    %1625 = vmatprep.subr.mxu0 0.0
    %1626 = vmatpush1.msra.mxu0 %v1602
    %1627 = vmatprep.subr.mxu0 0.0
    %1628 = vmatpush1.msra.mxu0 %v1603
    %1629 = vmatprep.subr.mxu0 0.0
    %1630 = vmatpush1.msra.mxu0 %v1604
    %1631 = vmatprep.subr.mxu0 0.0
    %1632 = vmatpush1.msra.mxu0 %v1605
    %1633 = vmatprep.subr.mxu0 0.0
    %1634 = vmatpush1.msra.mxu0 %v1606
    %1635 = vmatprep.subr.mxu0 0.0
    %1636 = vmatpush1.msra.mxu0 0.0
    %1637 = vmatprep.subr.mxu0 0.0
    %1638 = vmatpush1.msra.mxu0 0.0
    %1639 = vmatprep.subr.mxu0 0.0
    %1640 = vmatpush1.msra.mxu0 0.0
    %1641 = vmatprep.subr.mxu0 0.0
    %1642 = vmatpush1.msra.mxu0 0.0
    %1643 = vmatprep.subr.mxu0 0.0
    %1644 = vmatpush1.msra.mxu0 0.0
    %1645 = vmatprep.subr.mxu0 0.0
    %1646 = vmatpush1.msra.mxu0 0.0
    %1647 = vmatprep.subr.mxu0 0.0
    %1648 = vmatpush1.msra.mxu0 0.0
    %1649 = vmatprep.subr.mxu0 0.0
    %1650 = vmatpush1.msra.mxu0 0.0
    %1651 = vmatprep.subr.mxu0 0.0
    %1652 = vmatpush1.msra.mxu0 0.0
    %1653 = vmatprep.subr.mxu0 0.0
    %1654 = vmatpush1.msra.mxu0 0.0
    %1655 = vmatprep.subr.mxu0 0.0
    %1656 = vmatpush1.msra.mxu0 0.0
    %1657 = vmatprep.subr.mxu0 0.0
    %1658 = vmatpush1.msra.mxu0 0.0
    %1659 = vmatprep.subr.mxu0 0.0
    %1660 = vmatpush1.msra.mxu0 0.0
    %1661 = vmatprep.subr.mxu0 0.0
    %1662 = vmatpush1.msra.mxu0 0.0
    %1663 = vmatprep.subr.mxu0 0.0
    %1664 = vmatpush1.msra.mxu0 0.0
    %1665 = vmatprep.subr.mxu0 0.0
    %1666 = vmatpush1.msra.mxu0 0.0
    %1667 = vmatprep.subr.mxu0 0.0
    %1668 = vmatpush1.msra.mxu0 0.0
    %1669 = vmatprep.subr.mxu0 0.0
    %1670 = vmatpush1.msra.mxu0 0.0
    %1671 = vmatprep.subr.mxu0 0.0
    %1672 = vmatpush1.msra.mxu0 0.0
    %1673 = vmatprep.subr.mxu0 0.0
    %1674 = vmatpush1.msra.mxu0 0.0
    %1675 = vmatprep.subr.mxu0 0.0
    %1676 = vmatpush1.msra.mxu0 0.0
    %1677 = vmatprep.subr.mxu0 0.0
    %1678 = vmatpush1.msra.mxu0 0.0
    %1679 = vmatprep.subr.mxu0 0.0
    %1680 = vmatpush1.msra.mxu0 0.0
    %1681 = vmatprep.subr.mxu0 0.0
    %1682 = vmatpush1.msra.mxu0 0.0
    %1683 = vmatprep.mubr.f32.mxu0 0.0
    %1684 = vmatmul.mubr.f32.gmra.mrb[0].mxu0 %v1614
    %v1685 = vpop.f32.mrb[0].mxu0
    %v1686 = vadd.f32 %v1611, %v1685
    %v1687 = vpop.f32.mrb[0].mxu0
    %1688 = vmatprep.mubr.f32.mxu0 0.0
    %1689 = vmatmul.mubr.f32.gmra.mrb[0].mxu0 %v1617
    %v1690 = vpop.f32.mrb[0].mxu0
    %v1691 = vadd.f32 %v1611, %v1690
    %v1692 = vpop.f32.mrb[0].mxu0
    %1693 = vdwg.mxu0
    %vm1694 = vcmp.gt.f32.partialorder %v1686, 0.0
    %vm1695 = vcmp.gt.f32.partialorder %v1691, 0.0
    %v1696 = vmul.f32 %v1686, 1.442695
    %v1697 = vpow.pop %v1696
    %v1698 = vmul.f32 %v1691, 1.442695
    %v1699 = vpow.pop %v1698
    %v1700 = vsub.f32 %v1697, 1.0
    %v1701 = vsub.f32 %v1699, 1.0
    %v1702 = vsel %vm1694, %v1686, %v1700
    %v1703 = vsel %vm1695, %v1691, %v1701
    %v1704 = vld [vmem:[#allocation2 + $0x158] sm:$0xff]
    %v1705 = vld [vmem:[#allocation2 + $0x160] sm:$0xff]
    %v1706 = vld [vmem:[#allocation2 + $0x168] sm:$0xff]
    %v1707 = vld [vmem:[#allocation2 + $0x170] sm:$0xff]
    %v1708 = vld [vmem:[#allocation2 + $0x178] sm:$0xff]
    %v1709 = vld [vmem:[#allocation2 + $0x180] sm:$0xff]
    %v1710 = vld [vmem:[#allocation2 + $0x188] sm:$0xff]
    %v1711 = vld [vmem:[#allocation2 + $0x190] sm:$0xff]
    %v1712 = vld [vmem:[#allocation2 + $0x198] sm:$0x1]
    %v1713 = vlaneseq
    %v1714 = vshrl.u32 %v1713, 7
    %v1715 = vsub.s32 0, %v1714
    %v1716 = vrot.slane %v1712, %v1715
    %v1718 = vsel %vm1612, %v1702, 0
    %v1721 = vsel %vm1612, %v1703, 0
    %1723 = vmatprep.subr.mxu0 0.0
    %1724 = vmatpush1.msra.mxu0 %v1704
    %1725 = vmatprep.subr.mxu0 0.0
    %1726 = vmatpush1.msra.mxu0 %v1705
    %1727 = vmatprep.subr.mxu0 0.0
    %1728 = vmatpush1.msra.mxu0 %v1706
    %1729 = vmatprep.subr.mxu0 0.0
    %1730 = vmatpush1.msra.mxu0 %v1707
    %1731 = vmatprep.subr.mxu0 0.0
    %1732 = vmatpush1.msra.mxu0 %v1708
    %1733 = vmatprep.subr.mxu0 0.0
    %1734 = vmatpush1.msra.mxu0 %v1709
    %1735 = vmatprep.subr.mxu0 0.0
    %1736 = vmatpush1.msra.mxu0 %v1710
    %1737 = vmatprep.subr.mxu0 0.0
    %1738 = vmatpush1.msra.mxu0 %v1711
    %1739 = vmatprep.subr.mxu0 0.0
    %1740 = vmatpush1.msra.mxu0 0.0
    %1741 = vmatprep.subr.mxu0 0.0
    %1742 = vmatpush1.msra.mxu0 0.0
    %1743 = vmatprep.subr.mxu0 0.0
    %1744 = vmatpush1.msra.mxu0 0.0
    %1745 = vmatprep.subr.mxu0 0.0
    %1746 = vmatpush1.msra.mxu0 0.0
    %1747 = vmatprep.subr.mxu0 0.0
    %1748 = vmatpush1.msra.mxu0 0.0
    %1749 = vmatprep.subr.mxu0 0.0
    %1750 = vmatpush1.msra.mxu0 0.0
    %1751 = vmatprep.subr.mxu0 0.0
    %1752 = vmatpush1.msra.mxu0 0.0
    %1753 = vmatprep.subr.mxu0 0.0
    %1754 = vmatpush1.msra.mxu0 0.0
    %1755 = vmatprep.subr.mxu0 0.0
    %1756 = vmatpush1.msra.mxu0 0.0
    %1757 = vmatprep.subr.mxu0 0.0
    %1758 = vmatpush1.msra.mxu0 0.0
    %1759 = vmatprep.subr.mxu0 0.0
    %1760 = vmatpush1.msra.mxu0 0.0
    %1761 = vmatprep.subr.mxu0 0.0
    %1762 = vmatpush1.msra.mxu0 0.0
    %1763 = vmatprep.subr.mxu0 0.0
    %1764 = vmatpush1.msra.mxu0 0.0
    %1765 = vmatprep.subr.mxu0 0.0
    %1766 = vmatpush1.msra.mxu0 0.0
    %1767 = vmatprep.subr.mxu0 0.0
    %1768 = vmatpush1.msra.mxu0 0.0
    %1769 = vmatprep.subr.mxu0 0.0
    %1770 = vmatpush1.msra.mxu0 0.0
    %1771 = vmatprep.subr.mxu0 0.0
    %1772 = vmatpush1.msra.mxu0 0.0
    %1773 = vmatprep.subr.mxu0 0.0
    %1774 = vmatpush1.msra.mxu0 0.0
    %1775 = vmatprep.subr.mxu0 0.0
    %1776 = vmatpush1.msra.mxu0 0.0
    %1777 = vmatprep.subr.mxu0 0.0
    %1778 = vmatpush1.msra.mxu0 0.0
    %1779 = vmatprep.subr.mxu0 0.0
    %1780 = vmatpush1.msra.mxu0 0.0
    %1781 = vmatprep.subr.mxu0 0.0
    %1782 = vmatpush1.msra.mxu0 0.0
    %1783 = vmatprep.subr.mxu0 0.0
    %1784 = vmatpush1.msra.mxu0 0.0
    %1785 = vmatprep.subr.mxu0 0.0
    %1786 = vmatpush1.msra.mxu0 0.0
    %1787 = vmatprep.mubr.f32.mxu0 0.0
    %1788 = vmatmul.mubr.f32.gmra.mrb[0].mxu0 %v1718
    %v1789 = vpop.f32.mrb[0].mxu0
    %v1790 = vadd.f32 %v1716, %v1789
    %v1791 = vpop.f32.mrb[0].mxu0
    %1792 = vmatprep.mubr.f32.mxu0 0.0
    %1793 = vmatmul.mubr.f32.gmra.mrb[0].mxu0 %v1721
    %v1794 = vpop.f32.mrb[0].mxu0
    %v1795 = vadd.f32 %v1716, %v1794
    %v1796 = vpop.f32.mrb[0].mxu0
    %1797 = vdwg.mxu0
    %1798 = vst.msk [vmem:[#allocation5] sm:$0xff] %vm329, %v1790
    %1799 = vst.msk [vmem:[#allocation5 + $0x8] sm:$0xff] %vm329, %v1795
    // Predicated region
    $region22: #{tpu_custom_call.1} parent=1 // pred_check
      _
    $region23: #{tpu_custom_call.1} parent=1 // pred_check_branch
      %1801 = sbr.rel (0) target = $region25
    $region24: #{tpu_custom_call.1} parent=1 // pred_region
      %s1803 = ssub.s32 256, 256
      %1804 = vsyncadd [#allocation4], %s1803
      %s1805 = sshll.u32 [#allocation5], 4
      %s1806 = int_to_ptr.vmem [resolvable:$true] %s1805
      %1811 = dma.vmem_to_hbm [thread:$0]  %s1806, 256, %s4, [#allocation4], 128, 128, 8
    $region25: #{tpu_custom_call.1} parent=1 // pred_fallthru
      _
    // Predicated region
    $region26: #{tpu_custom_call.1} parent=1 // pred_check
      _
    $region27: #{tpu_custom_call.1} parent=1 // pred_check_branch
      %1813 = sbr.rel (0) target = $region29
    $region28: #{tpu_custom_call.1} parent=1 // pred_region
      _
    $region29: #{tpu_custom_call.1} parent=1 // pred_fallthru
      _
    // Predicated region
    $region30: #{tpu_custom_call.1} parent=1 // pred_check
      _
    $region31: #{tpu_custom_call.1} parent=1 // pred_check_branch
      %1815 = sbr.rel (0) target = $region33
    $region32: #{tpu_custom_call.1} parent=1 // pred_region
      %1816 = dma.done [#allocation4], 256
    $region33: #{tpu_custom_call.1} parent=1 // pred_fallthru
      _
    // Predicated region
    $region34: #{tpu_custom_call.1} parent=1 // pred_check
      _
    $region35: #{tpu_custom_call.1} parent=1 // pred_check_branch
      %1818 = sbr.rel (0) target = $region37
    $region36: #{tpu_custom_call.1} parent=1 // pred_region
      _
    $region37: #{tpu_custom_call.1} parent=1 // pred_fallthru
      _
    %1819 = vsyncpa [#allocation3], 1
    %1820 = vsyncpa [#allocation4], 1

</llo_original>
